<compile_context>
chip_gen: v7x
topology: tpu7x:2x2x1
jax: 0.10.0
libtpu: 0.0.40
codegen_flags: <defaults>
</compile_context>

<pallas_src>
import functools

import jax
import jax.numpy as jnp
from jax import lax
from jax.experimental import pallas as pl
from jax.experimental.pallas import tpu as pltpu


def _neg_value(dtype):
    if jnp.issubdtype(dtype, jnp.floating):
        return jnp.array(-jnp.inf, dtype)
    return jnp.array(jnp.iinfo(dtype).min, dtype)


def _spp_kernel(x_ref, out_ref, pad_ref, *, deltas, pad):
    """One (batch, channel-block) tile of SPP.

    x_ref:   (1, H, W, Cb)           channels-last (lane-dense) input tile
    out_ref: (1, G, H, W, Cb)        groups = [largest pool, ..., smallest pool, x]
    pad_ref: (H+2*pad, W+2*pad, Cb)  -inf-padded VMEM scratch
    """
    x = x_ref[0]
    h, w, _ = x.shape
    neg = _neg_value(x.dtype)
    n_stage = len(deltas)

    # Identity group first: start output stores / writeback as early as possible.
    out_ref[0, n_stage] = x

    # (Re)build the -inf halo every step: a cheap VMEM fill, and correct even
    # when megacore splits the grid across cores (each core's scratch is
    # uninitialized on its own first step).
    pad_ref[...] = jnp.full(pad_ref.shape, neg, x.dtype)
    pad_ref[pad:pad + h, pad:pad + w, :] = x

    # SPPF cascade of window-`d` "same" max pools (deltas are all 5 for the
    # default [5, 9, 13] pool sizes).
    for i, d in enumerate(deltas):
        r = (d - 1) // 2
        pv = pad_ref[pad - r:pad + h + r, pad - r:pad + w + r, :]
        # H axis: slices along the outer dim are plain address offsets.
        ph = pv[0:h]
        for s in range(1, 2 * r + 1):
            ph = jnp.maximum(ph, pv[s:s + h])
        # W axis: sublane-offset slices (XLU shifts) + VPU max.
        pw = ph[:, 0:w, :]
        for s in range(1, 2 * r + 1):
            pw = jnp.maximum(pw, ph[:, s:s + w, :])
        # torch.cat order: largest pool first.
        out_ref[0, n_stage - 1 - i] = pw
        if i + 1 < n_stage:
            pad_ref[pad:pad + h, pad:pad + w, :] = pw


def _choose_c_block(c, h, w, itemsize, n_batch, n_groups, max_radius):
    """Channel-block size: lane-dense (multiple of 128 or full C), VMEM-aware."""
    if c % 128 != 0:
        # Small / irregular channel counts: full-C block (legal since it equals
        # the full array dim on the lane axis).
        return c
    hp, wp = h + 2 * max_radius, w + 2 * max_radius
    # Per grid step: double-buffered input + G output blocks, plus the padded
    # scratch and ~2 in-flight padded temporaries.
    bytes_per_chan = (2 * (1 + n_groups) * h * w + 3 * hp * wp) * itemsize
    budget = 24 * 1024 * 1024          # headroom under the 32 MiB scoped limit
    cap = max(128, (budget // bytes_per_chan) // 128 * 128)
    cands = [d for d in range(128, c + 1, 128) if c % d == 0 and d <= cap]
    if not cands:
        return 128
    # Prefer the largest block that still leaves >= 8 pipeline steps overall
    # and >= 2 channel blocks when batch == 1 (v7x megacore).
    good = [d for d in cands
            if n_batch * (c // d) >= 8 and (n_batch >= 2 or c // d >= 2)]
    return max(good) if good else min(cands)


def spatial_pyramid_pooling(x, pool_sizes=(5, 9, 13)):
    """x: (N, C, H, W). Returns (N, (len(pool_sizes)+1)*C, H, W)."""
    n, c, h, w = x.shape
    sizes = list(pool_sizes)
    assert sizes == sorted(sizes), "pool_sizes must be increasing"
    assert all(k % 2 == 1 for k in sizes), "pool sizes must be odd"
    # Cascade deltas: a 'same' pool of window d on top of accumulated window
    # w_prev yields an effective window of w_prev + d - 1.
    deltas = [sizes[0]] + [b - a + 1 for a, b in zip(sizes[:-1], sizes[1:])]
    assert all(d % 2 == 1 and d >= 1 for d in deltas)
    g = len(sizes) + 1
    max_radius = max((d - 1) // 2 for d in deltas)

    itemsize = x.dtype.itemsize
    c_blk = _choose_c_block(c, h, w, itemsize, n, g, max_radius)
    grid = (n, c // c_blk)

    # Channels-last so C sits on the 128-lane axis inside the kernel.
    x_nhwc = jnp.transpose(x, (0, 2, 3, 1))

    kernel = functools.partial(_spp_kernel, deltas=tuple(deltas), pad=max_radius)
    cost = pl.CostEstimate(
        flops=int(n * c * h * w * sum(2 * (d - 1) for d in deltas)),
        transcendentals=0,
        bytes_accessed=int((1 + g) * n * c * h * w * itemsize),
    )

    out5d = pl.pallas_call(
        kernel,
        out_shape=jax.ShapeDtypeStruct((n, g, h, w, c), x.dtype),
        grid_spec=pltpu.PrefetchScalarGridSpec(
            num_scalar_prefetch=0,
            grid=grid,
            in_specs=[
                pl.BlockSpec((1, h, w, c_blk), lambda ni, ci: (ni, 0, 0, ci)),
            ],
            out_specs=pl.BlockSpec(
                (1, g, h, w, c_blk), lambda ni, ci: (ni, 0, 0, 0, ci)),
            scratch_shapes=[
                pltpu.VMEM((h + 2 * max_radius, w + 2 * max_radius, c_blk),
                           x.dtype),
            ],
        ),
        compiler_params=pltpu.CompilerParams(
            dimension_semantics=("parallel", "parallel"),
            vmem_limit_bytes=32 * 1024 * 1024),
        cost_estimate=cost,
    )(x_nhwc)

    # (N, G, H, W, C) -> (N, G, C, H, W) -> (N, G*C, H, W): exactly the
    # torch.cat([mp_13(x), mp_9(x), mp_5(x), x], dim=1) channel layout.
    return jnp.transpose(out5d, (0, 1, 4, 2, 3)).reshape(n, g * c, h, w)


# ----------------------------- pure-JAX reference -----------------------------

def _maxpool2d_ref(x, k):
    p = k // 2
    return lax.reduce_window(
        x, -jnp.inf, lax.max,
        window_dimensions=(1, 1, k, k),
        window_strides=(1, 1, 1, 1),
        padding=((0, 0), (0, 0), (p, p), (p, p)))


def _reference(x, pool_sizes=(5, 9, 13)):
    feats = [_maxpool2d_ref(x, k) for k in list(pool_sizes)[::-1]]
    return jnp.concatenate(feats + [x], axis=1)


if __name__ == "__main__":
    key = jax.random.PRNGKey(0)

    # Small module-consistent shapes.
    N, C, H, W = 2, 4, 16, 16
    x = jax.random.normal(key, (N, C, H, W), dtype=jnp.float32)
    out = jax.block_until_ready(spatial_pyramid_pooling(x))
    ref = _reference(x)
    assert out.shape == (N, 4 * C, H, W), out.shape
    assert jnp.allclose(out, ref, atol=1e-6, rtol=0.0), "mismatch vs reference"

    # Second check exercising the lane-dense (C multiple of 128) path at a
    # realistic SPP spatial size.
    key2 = jax.random.PRNGKey(0)
    x2 = jax.random.normal(key2, (1, 128, 13, 13), dtype=jnp.float32)
    out2 = jax.block_until_ready(spatial_pyramid_pooling(x2))
    ref2 = _reference(x2)
    assert out2.shape == (1, 4 * 128, 13, 13), out2.shape
    assert jnp.allclose(out2, ref2, atol=1e-6, rtol=0.0), "mismatch vs reference (128ch)"

    print("KERNEL_OK")
</pallas_src>

<mosaic_0001>
module attributes {stable_mosaic.version = 11 : i64} {
  func.func @_spp_kernel(%arg0: i32, %arg1: i32, %arg2: memref<1x16x16x4xf32, #tpu.memory_space<vmem>>, %arg3: memref<1x4x16x16x4xf32, #tpu.memory_space<vmem>>, %arg4: memref<20x20x4xf32, #tpu.memory_space<vmem>>) attributes {dimension_semantics = [#tpu.dimension_semantics<parallel>, #tpu.dimension_semantics<parallel>], iteration_bounds = array<i64: 2, 1>, scalar_prefetch = 0 : i64, scratch_operands = 1 : i64, tpu.core_type = #tpu.core_type<tc>, window_params = [{transform_indices = @transform_0, window_bounds = array<i64: 1, 16, 16, 4>}, {transform_indices = @transform_1, window_bounds = array<i64: 1, 4, 16, 16, 4>}]} {
    %c0 = arith.constant 0 : index
    %c0_0 = arith.constant 0 : index
    %c0_1 = arith.constant 0 : index
    %c0_2 = arith.constant 0 : index
    %0 = vector.load %arg2[%c0, %c0_0, %c0_1, %c0_2] : memref<1x16x16x4xf32, #tpu.memory_space<vmem>>, vector<1x16x16x4xf32>
    %1 = vector.shape_cast %0 : vector<1x16x16x4xf32> to vector<16x16x4xf32>
    %c0_3 = arith.constant 0 : index
    %c3 = arith.constant 3 : index
    %c0_4 = arith.constant 0 : index
    %c0_5 = arith.constant 0 : index
    %c0_6 = arith.constant 0 : index
    %2 = vector.load %arg3[%c0_3, %c3, %c0_4, %c0_5, %c0_6] : memref<1x4x16x16x4xf32, #tpu.memory_space<vmem>>, vector<1x1x16x16x4xf32>
    %3 = vector.shape_cast %2 : vector<1x1x16x16x4xf32> to vector<16x16x4xf32>
    %4 = vector.shape_cast %1 : vector<16x16x4xf32> to vector<1x1x16x16x4xf32>
    tpu.vector_store %arg3[%c0_3, %c3, %c0_4, %c0_5, %c0_6], %4 {strides = array<i32>} : memref<1x4x16x16x4xf32, #tpu.memory_space<vmem>>, vector<1x1x16x16x4xf32>,
    %cst = arith.constant 0xFF800000 : f32
    %5 = vector.broadcast %cst : f32 to vector<20x20x4xf32>
    %c0_7 = arith.constant 0 : index
    %c0_8 = arith.constant 0 : index
    %c0_9 = arith.constant 0 : index
    %6 = vector.load %arg4[%c0_7, %c0_8, %c0_9] : memref<20x20x4xf32, #tpu.memory_space<vmem>>, vector<20x20x4xf32>
    tpu.vector_store %arg4[%c0_7, %c0_8, %c0_9], %5 {strides = array<i32>} : memref<20x20x4xf32, #tpu.memory_space<vmem>>, vector<20x20x4xf32>,
    %c2 = arith.constant 2 : index
    %c2_10 = arith.constant 2 : index
    %c0_11 = arith.constant 0 : index
    %7 = vector.load %arg4[%c2, %c2_10, %c0_11] : memref<20x20x4xf32, #tpu.memory_space<vmem>>, vector<16x16x4xf32>
    tpu.vector_store %arg4[%c2, %c2_10, %c0_11], %1 {strides = array<i32>} : memref<20x20x4xf32, #tpu.memory_space<vmem>>, vector<16x16x4xf32>,
    %c0_12 = arith.constant 0 : index
    %c0_13 = arith.constant 0 : index
    %c0_14 = arith.constant 0 : index
    %8 = vector.load %arg4[%c0_12, %c0_13, %c0_14] : memref<20x20x4xf32, #tpu.memory_space<vmem>>, vector<20x20x4xf32>
    %9 = vector.extract_strided_slice %8 {offsets = [0, 0, 0], sizes = [16, 20, 4], strides = [1, 1, 1]} : vector<20x20x4xf32> to vector<16x20x4xf32>
    %10 = vector.extract_strided_slice %8 {offsets = [1, 0, 0], sizes = [16, 20, 4], strides = [1, 1, 1]} : vector<20x20x4xf32> to vector<16x20x4xf32>
    %11 = arith.maximumf %9, %10 : vector<16x20x4xf32>
    %12 = vector.extract_strided_slice %8 {offsets = [2, 0, 0], sizes = [16, 20, 4], strides = [1, 1, 1]} : vector<20x20x4xf32> to vector<16x20x4xf32>
    %13 = arith.maximumf %11, %12 : vector<16x20x4xf32>
    %14 = vector.extract_strided_slice %8 {offsets = [3, 0, 0], sizes = [16, 20, 4], strides = [1, 1, 1]} : vector<20x20x4xf32> to vector<16x20x4xf32>
    %15 = arith.maximumf %13, %14 : vector<16x20x4xf32>
    %16 = vector.extract_strided_slice %8 {offsets = [4, 0, 0], sizes = [16, 20, 4], strides = [1, 1, 1]} : vector<20x20x4xf32> to vector<16x20x4xf32>
    %17 = arith.maximumf %15, %16 : vector<16x20x4xf32>
    %18 = vector.extract_strided_slice %17 {offsets = [0, 0, 0], sizes = [16, 16, 4], strides = [1, 1, 1]} : vector<16x20x4xf32> to vector<16x16x4xf32>
    %19 = vector.extract_strided_slice %17 {offsets = [0, 1, 0], sizes = [16, 16, 4], strides = [1, 1, 1]} : vector<16x20x4xf32> to vector<16x16x4xf32>
    %20 = arith.maximumf %18, %19 : vector<16x16x4xf32>
    %21 = vector.extract_strided_slice %17 {offsets = [0, 2, 0], sizes = [16, 16, 4], strides = [1, 1, 1]} : vector<16x20x4xf32> to vector<16x16x4xf32>
    %22 = arith.maximumf %20, %21 : vector<16x16x4xf32>
    %23 = vector.extract_strided_slice %17 {offsets = [0, 3, 0], sizes = [16, 16, 4], strides = [1, 1, 1]} : vector<16x20x4xf32> to vector<16x16x4xf32>
    %24 = arith.maximumf %22, %23 : vector<16x16x4xf32>
    %25 = vector.extract_strided_slice %17 {offsets = [0, 4, 0], sizes = [16, 16, 4], strides = [1, 1, 1]} : vector<16x20x4xf32> to vector<16x16x4xf32>
    %26 = arith.maximumf %24, %25 : vector<16x16x4xf32>
    %c0_15 = arith.constant 0 : index
    %c2_16 = arith.constant 2 : index
    %c0_17 = arith.constant 0 : index
    %c0_18 = arith.constant 0 : index
    %c0_19 = arith.constant 0 : index
    %27 = vector.load %arg3[%c0_15, %c2_16, %c0_17, %c0_18, %c0_19] : memref<1x4x16x16x4xf32, #tpu.memory_space<vmem>>, vector<1x1x16x16x4xf32>
    %28 = vector.shape_cast %27 : vector<1x1x16x16x4xf32> to vector<16x16x4xf32>
    %29 = vector.shape_cast %26 : vector<16x16x4xf32> to vector<1x1x16x16x4xf32>
    tpu.vector_store %arg3[%c0_15, %c2_16, %c0_17, %c0_18, %c0_19], %29 {strides = array<i32>} : memref<1x4x16x16x4xf32, #tpu.memory_space<vmem>>, vector<1x1x16x16x4xf32>,
    %c2_20 = arith.constant 2 : index
    %c2_21 = arith.constant 2 : index
    %c0_22 = arith.constant 0 : index
    %30 = vector.load %arg4[%c2_20, %c2_21, %c0_22] : memref<20x20x4xf32, #tpu.memory_space<vmem>>, vector<16x16x4xf32>
    tpu.vector_store %arg4[%c2_20, %c2_21, %c0_22], %26 {strides = array<i32>} : memref<20x20x4xf32, #tpu.memory_space<vmem>>, vector<16x16x4xf32>,
    %c0_23 = arith.constant 0 : index
    %c0_24 = arith.constant 0 : index
    %c0_25 = arith.constant 0 : index
    %31 = vector.load %arg4[%c0_23, %c0_24, %c0_25] : memref<20x20x4xf32, #tpu.memory_space<vmem>>, vector<20x20x4xf32>
    %32 = vector.extract_strided_slice %31 {offsets = [0, 0, 0], sizes = [16, 20, 4], strides = [1, 1, 1]} : vector<20x20x4xf32> to vector<16x20x4xf32>
    %33 = vector.extract_strided_slice %31 {offsets = [1, 0, 0], sizes = [16, 20, 4], strides = [1, 1, 1]} : vector<20x20x4xf32> to vector<16x20x4xf32>
    %34 = arith.maximumf %32, %33 : vector<16x20x4xf32>
    %35 = vector.extract_strided_slice %31 {offsets = [2, 0, 0], sizes = [16, 20, 4], strides = [1, 1, 1]} : vector<20x20x4xf32> to vector<16x20x4xf32>
    %36 = arith.maximumf %34, %35 : vector<16x20x4xf32>
    %37 = vector.extract_strided_slice %31 {offsets = [3, 0, 0], sizes = [16, 20, 4], strides = [1, 1, 1]} : vector<20x20x4xf32> to vector<16x20x4xf32>
    %38 = arith.maximumf %36, %37 : vector<16x20x4xf32>
    %39 = vector.extract_strided_slice %31 {offsets = [4, 0, 0], sizes = [16, 20, 4], strides = [1, 1, 1]} : vector<20x20x4xf32> to vector<16x20x4xf32>
    %40 = arith.maximumf %38, %39 : vector<16x20x4xf32>
    %41 = vector.extract_strided_slice %40 {offsets = [0, 0, 0], sizes = [16, 16, 4], strides = [1, 1, 1]} : vector<16x20x4xf32> to vector<16x16x4xf32>
    %42 = vector.extract_strided_slice %40 {offsets = [0, 1, 0], sizes = [16, 16, 4], strides = [1, 1, 1]} : vector<16x20x4xf32> to vector<16x16x4xf32>
    %43 = arith.maximumf %41, %42 : vector<16x16x4xf32>
    %44 = vector.extract_strided_slice %40 {offsets = [0, 2, 0], sizes = [16, 16, 4], strides = [1, 1, 1]} : vector<16x20x4xf32> to vector<16x16x4xf32>
    %45 = arith.maximumf %43, %44 : vector<16x16x4xf32>
    %46 = vector.extract_strided_slice %40 {offsets = [0, 3, 0], sizes = [16, 16, 4], strides = [1, 1, 1]} : vector<16x20x4xf32> to vector<16x16x4xf32>
    %47 = arith.maximumf %45, %46 : vector<16x16x4xf32>
    %48 = vector.extract_strided_slice %40 {offsets = [0, 4, 0], sizes = [16, 16, 4], strides = [1, 1, 1]} : vector<16x20x4xf32> to vector<16x16x4xf32>
    %49 = arith.maximumf %47, %48 : vector<16x16x4xf32>
    %c0_26 = arith.constant 0 : index
    %c1 = arith.constant 1 : index
    %c0_27 = arith.constant 0 : index
    %c0_28 = arith.constant 0 : index
    %c0_29 = arith.constant 0 : index
    %50 = vector.load %arg3[%c0_26, %c1, %c0_27, %c0_28, %c0_29] : memref<1x4x16x16x4xf32, #tpu.memory_space<vmem>>, vector<1x1x16x16x4xf32>
    %51 = vector.shape_cast %50 : vector<1x1x16x16x4xf32> to vector<16x16x4xf32>
    %52 = vector.shape_cast %49 : vector<16x16x4xf32> to vector<1x1x16x16x4xf32>
    tpu.vector_store %arg3[%c0_26, %c1, %c0_27, %c0_28, %c0_29], %52 {strides = array<i32>} : memref<1x4x16x16x4xf32, #tpu.memory_space<vmem>>, vector<1x1x16x16x4xf32>,
    %c2_30 = arith.constant 2 : index
    %c2_31 = arith.constant 2 : index
    %c0_32 = arith.constant 0 : index
    %53 = vector.load %arg4[%c2_30, %c2_31, %c0_32] : memref<20x20x4xf32, #tpu.memory_space<vmem>>, vector<16x16x4xf32>
    tpu.vector_store %arg4[%c2_30, %c2_31, %c0_32], %49 {strides = array<i32>} : memref<20x20x4xf32, #tpu.memory_space<vmem>>, vector<16x16x4xf32>,
    %c0_33 = arith.constant 0 : index
    %c0_34 = arith.constant 0 : index
    %c0_35 = arith.constant 0 : index
    %54 = vector.load %arg4[%c0_33, %c0_34, %c0_35] : memref<20x20x4xf32, #tpu.memory_space<vmem>>, vector<20x20x4xf32>
    %55 = vector.extract_strided_slice %54 {offsets = [0, 0, 0], sizes = [16, 20, 4], strides = [1, 1, 1]} : vector<20x20x4xf32> to vector<16x20x4xf32>
    %56 = vector.extract_strided_slice %54 {offsets = [1, 0, 0], sizes = [16, 20, 4], strides = [1, 1, 1]} : vector<20x20x4xf32> to vector<16x20x4xf32>
    %57 = arith.maximumf %55, %56 : vector<16x20x4xf32>
    %58 = vector.extract_strided_slice %54 {offsets = [2, 0, 0], sizes = [16, 20, 4], strides = [1, 1, 1]} : vector<20x20x4xf32> to vector<16x20x4xf32>
    %59 = arith.maximumf %57, %58 : vector<16x20x4xf32>
    %60 = vector.extract_strided_slice %54 {offsets = [3, 0, 0], sizes = [16, 20, 4], strides = [1, 1, 1]} : vector<20x20x4xf32> to vector<16x20x4xf32>
    %61 = arith.maximumf %59, %60 : vector<16x20x4xf32>
    %62 = vector.extract_strided_slice %54 {offsets = [4, 0, 0], sizes = [16, 20, 4], strides = [1, 1, 1]} : vector<20x20x4xf32> to vector<16x20x4xf32>
    %63 = arith.maximumf %61, %62 : vector<16x20x4xf32>
    %64 = vector.extract_strided_slice %63 {offsets = [0, 0, 0], sizes = [16, 16, 4], strides = [1, 1, 1]} : vector<16x20x4xf32> to vector<16x16x4xf32>
    %65 = vector.extract_strided_slice %63 {offsets = [0, 1, 0], sizes = [16, 16, 4], strides = [1, 1, 1]} : vector<16x20x4xf32> to vector<16x16x4xf32>
    %66 = arith.maximumf %64, %65 : vector<16x16x4xf32>
    %67 = vector.extract_strided_slice %63 {offsets = [0, 2, 0], sizes = [16, 16, 4], strides = [1, 1, 1]} : vector<16x20x4xf32> to vector<16x16x4xf32>
    %68 = arith.maximumf %66, %67 : vector<16x16x4xf32>
    %69 = vector.extract_strided_slice %63 {offsets = [0, 3, 0], sizes = [16, 16, 4], strides = [1, 1, 1]} : vector<16x20x4xf32> to vector<16x16x4xf32>
    %70 = arith.maximumf %68, %69 : vector<16x16x4xf32>
    %71 = vector.extract_strided_slice %63 {offsets = [0, 4, 0], sizes = [16, 16, 4], strides = [1, 1, 1]} : vector<16x20x4xf32> to vector<16x16x4xf32>
    %72 = arith.maximumf %70, %71 : vector<16x16x4xf32>
    %c0_36 = arith.constant 0 : index
    %c0_37 = arith.constant 0 : index
    %c0_38 = arith.constant 0 : index
    %c0_39 = arith.constant 0 : index
    %c0_40 = arith.constant 0 : index
    %73 = vector.load %arg3[%c0_36, %c0_37, %c0_38, %c0_39, %c0_40] : memref<1x4x16x16x4xf32, #tpu.memory_space<vmem>>, vector<1x1x16x16x4xf32>
    %74 = vector.shape_cast %73 : vector<1x1x16x16x4xf32> to vector<16x16x4xf32>
    %75 = vector.shape_cast %72 : vector<16x16x4xf32> to vector<1x1x16x16x4xf32>
    tpu.vector_store %arg3[%c0_36, %c0_37, %c0_38, %c0_39, %c0_40], %75 {strides = array<i32>} : memref<1x4x16x16x4xf32, #tpu.memory_space<vmem>>, vector<1x1x16x16x4xf32>,
    return
  }
  func.func @transform_0(%arg0: i32, %arg1: i32) -> (i32, i32, i32, i32) {
    %c0_i32 = arith.constant 0 : i32
    %c0_i32_0 = arith.constant 0 : i32
    %c0_i32_1 = arith.constant 0 : i32
    return %arg0, %c0_i32, %c0_i32_0, %arg1 : i32, i32, i32, i32
  }
  func.func @transform_1(%arg0: i32, %arg1: i32) -> (i32, i32, i32, i32, i32) {
    %c0_i32 = arith.constant 0 : i32
    %c0_i32_0 = arith.constant 0 : i32
    %c0_i32_1 = arith.constant 0 : i32
    %c0_i32_2 = arith.constant 0 : i32
    return %arg0, %c0_i32, %c0_i32_0, %c0_i32_1, %arg1 : i32, i32, i32, i32, i32
  }
}

</mosaic_0001>

<llo_original>
// kernel: tpu_custom_call.1
$region0: #{tpu_custom_call.1}
  #allocation0 [shape = 'u32[]', space=smem, size = 0x4, offset = 0x4, fixed_abs, tag = 'smem constant byte address 0x4 - core index']
  #allocation1 [shape = 'u32[144,128]{1,0:T(1,128)}', space=vmem, size = 0x12000, scoped, tag = 'internal scratch']
  #allocation2 [shape = 'f32[20,20,4]{2,1,0:T(8,128)}', space=vmem, size = 0x3c000, scoped, tag = 'scratch operand']
  %s0 = inlined_call_operand.vmem [shape: f32[2,16,16,4], index: 0, kind: input, shape index: {}]
  %s1 = inlined_call_operand.vmem [shape: f32[2,4,16,16,4], index: 1, kind: output, shape index: {}]
  %s2 = sld [smem:[#allocation0]]
  $region37: #{tpu_custom_call.1} parent=0
    _
  %s4 = ssub.s32 1, %s2
  %s5 = scalar_select 0, %s4, %s2
  loop: start=0, step=1, limit=4
  $region2: #{tpu_custom_call.1} parent=0 // loop_pre_header
    _
  $region3: #{tpu_custom_call.1} parent=0 // loop_header
    %s7 = sphi 0, %s11
    %p8 = scmp.ge.s32.totalorder %s7, 4
    %s14 = sphi 0, %s26
    %s15 = sphi 0, %s22
    %s16 = sphi 0, %s14
    %s17 = sphi 0, %s15
    %s18 = sphi 0, %s16
    %s19 = sphi 0, %s17
    %s31 = sphi 0, %s33
    %s34 = sphi 0, %s31
    %s35 = sphi 0, %s34
    %s51 = sphi 0, %s35
    %s59 = sphi 0, %s61
    %s62 = sphi 0, %s59
    %s63 = sphi 0, %s62
    %s79 = sphi 0, %s63
  $region4: #{tpu_custom_call.1} parent=0 // loop_header_branch
    %10 = sbr.rel (%p8) target = $region8
  $region5: #{tpu_custom_call.1} parent=0 // loop_body
    %s12 = ssub.s32 %s7, 1
    %s13 = ssub.s32 %s7, 2
    %s20 = sadd.s32 1, %s15
    %p21 = scmp.ge.s32.totalorder %s20, 1
    %s22 = scalar_select %p21, 0, %s20
    %s23 = sadd.s32 1, %s14
    %s24 = scalar_select %p21, %s23, %s14
    %p25 = scmp.ge.s32.totalorder %s24, 2
    %s26 = scalar_select %p25, 0, %s24
    %s27 = ssub.s32 %s14, %s26
    %s28 = ssub.s32 %s15, %s22
    %s29 = sor.u32 %s27, %s28
    %p30 = scmp.eq.s32.totalorder %s29, 0
    %s32 = sadd.s32 %s31, 1
    %s33 = scalar_select %p30, %s31, %s32
    %p36 = pneg %p30
    %p37 = scmp.eq.s32.totalorder %s7, 1
    %p38 = por %p36, %p37
    %p39 = scmp.ne.s32.totalorder %s31, %s34
    %p40 = scmp.eq.s32.totalorder %s7, 0
    %p41 = por %p39, %p40
    %p42 = scmp.ne.s32.totalorder %s31, %s34
    %p43 = scmp.eq.s32.totalorder %s12, 1
    %p44 = por %p42, %p43
    %p45 = scmp.ne.s32.totalorder %s34, %s35
    %p46 = scmp.eq.s32.totalorder %s12, 0
    %p47 = por %p45, %p46
    %p48 = scmp.ne.s32.totalorder %s34, %s35
    %p49 = scmp.eq.s32.totalorder %s13, 1
    %p50 = por %p48, %p49
    %p52 = scmp.ne.s32.totalorder %s35, %s51
    %p53 = scmp.eq.s32.totalorder %s13, 0
    %p54 = por %p52, %p53
    %s55 = ssub.s32 %s14, %s26
    %s56 = ssub.s32 %s15, %s22
    %s57 = sor.u32 %s55, %s56
    %p58 = scmp.eq.s32.totalorder %s57, 0
    %s60 = sadd.s32 %s59, 1
    %s61 = scalar_select %p58, %s59, %s60
    %p64 = pneg %p58
    %p65 = scmp.eq.s32.totalorder %s7, 1
    %p66 = por %p64, %p65
    %p67 = scmp.ne.s32.totalorder %s59, %s62
    %p68 = scmp.eq.s32.totalorder %s7, 0
    %p69 = por %p67, %p68
    %p70 = scmp.ne.s32.totalorder %s59, %s62
    %p71 = scmp.eq.s32.totalorder %s12, 1
    %p72 = por %p70, %p71
    %p73 = scmp.ne.s32.totalorder %s62, %s63
    %p74 = scmp.eq.s32.totalorder %s12, 0
    %p75 = por %p73, %p74
    %p76 = scmp.ne.s32.totalorder %s62, %s63
    %p77 = scmp.eq.s32.totalorder %s13, 1
    %p78 = por %p76, %p77
    %p80 = scmp.ne.s32.totalorder %s63, %s79
    %p81 = scmp.eq.s32.totalorder %s13, 0
    %p82 = por %p80, %p81
    %p83 = scmp.le.s32.totalorder 1, %s7
    %p84 = scmp.lt.s32.totalorder %s7, 3
    %p85 = pnand %p83, %p84
    %p86 = pneg %p85
    // Predicated region
    $region9: #{tpu_custom_call.1} parent=5 // pred_check
      _
    $region10: #{tpu_custom_call.1} parent=5 // pred_check_branch
      %88 = sbr.rel (%p85) target = $region12
    $region11: #{tpu_custom_call.1} parent=5 // pred_region
      %s89 = ssub.s32 %s7, 1
    $region12: #{tpu_custom_call.1} parent=5 // pred_fallthru
      _
    %p90 = scmp.lt.s32.totalorder %s7, 2
    // Predicated region
    $region13: #{tpu_custom_call.1} parent=5 // pred_check
      %p91 = pneg %p90
    $region14: #{tpu_custom_call.1} parent=5 // pred_check_branch
      %93 = sbr.rel (%p91) target = $region16
    $region15: #{tpu_custom_call.1} parent=5 // pred_region
      // Predicated region
      $region17: #{tpu_custom_call.1} parent=15 // pred_check
        %p94 = pneg %p41
      $region18: #{tpu_custom_call.1} parent=15 // pred_check_branch
        %96 = sbr.rel (%p94) target = $region20
      $region19: #{tpu_custom_call.1} parent=15 // pred_region
        %p97 = scmp.lt.s32.totalorder %s14, 1
        %s98 = scalar_select %p97, %s14, 1
        %p99 = scmp.lt.s32.totalorder %s15, 0
        %s100 = scalar_select %p99, %s15, 0
        %s101 = smul.addr %s98, 32
        %s102 = sadd.s32 %s100, %s101
        %s103 = smul.addr %s102, 8
        %s104 = scalar_lea.vmem %s0, %s103
      $region20: #{tpu_custom_call.1} parent=15 // pred_fallthru
        _
    $region16: #{tpu_custom_call.1} parent=5 // pred_fallthru
      _
    %p105 = scmp.le.s32.totalorder 1, %s7
    %p106 = scmp.lt.s32.totalorder %s7, 3
    %p107 = pnand %p105, %p106
    %p108 = pneg %p107
    // Predicated region
    $region21: #{tpu_custom_call.1} parent=5 // pred_check
      _
    $region22: #{tpu_custom_call.1} parent=5 // pred_check_branch
      %110 = sbr.rel (%p107) target = $region24
    $region23: #{tpu_custom_call.1} parent=5 // pred_region
      %s111 = ssub.s32 %s7, 1
      %p112 = scmp.lt.s32.totalorder %s16, 1
      %s113 = scalar_select %p112, %s16, 1
      %p114 = scmp.lt.s32.totalorder %s17, 0
      %s115 = scalar_select %p114, %s17, 0
      %s116 = smul.addr %s113, 32
      %s117 = sadd.s32 %s115, %s116
      %s118 = smul.addr %s117, 8
      %s119 = scalar_lea.vmem %s0, %s118
      %p120 = pneg %p47
      %p121 = pneg %p44
      %p122 = pneg %p75
      %p123 = pneg %p72
      %p124 = scmp.lt.s32.totalorder %s16, 1
      %s125 = scalar_select %p124, %s16, 1
      %p126 = scmp.lt.s32.totalorder %s17, 0
      %s127 = scalar_select %p126, %s17, 0
      %s128 = smul.addr %s125, 128
      %s129 = sadd.s32 %s127, %s128
      %s130 = smul.addr %s129, 8
      %s131 = scalar_lea.vmem %s1, %s130
      %p132 = scmp.lt.s32.totalorder %s16, 1
      %s133 = scalar_select %p132, %s16, 1
      %p134 = scmp.lt.s32.totalorder %s17, 0
      %s135 = scalar_select %p134, %s17, 0
      %s136 = smul.addr %s133, 32
      %s137 = sadd.s32 %s135, %s136
      %s138 = smul.addr %s137, 8
      %s139 = scalar_lea.vmem %s0, %s138
      %p140 = scmp.lt.s32.totalorder %s16, 1
      %s141 = scalar_select %p140, %s16, 1
      %p142 = scmp.lt.s32.totalorder %s17, 0
      %s143 = scalar_select %p142, %s17, 0
      %s144 = smul.addr %s141, 128
      %s145 = sadd.s32 %s143, %s144
      %s146 = smul.addr %s145, 8
      %s147 = scalar_lea.vmem %s1, %s146
      %v148 = vld [vmem:[%s139] sm:$0xff]
      %v149 = vld [vmem:[%s139 + $0x8] sm:$0xff]
      %v150 = vld [vmem:[%s139 + $0x10] sm:$0xff]
      %v151 = vld [vmem:[%s139 + $0x18] sm:$0xff]
      %v152 = vld [vmem:[%s139 + $0x20] sm:$0xff]
      %v153 = vld [vmem:[%s139 + $0x28] sm:$0xff]
      %v154 = vld [vmem:[%s139 + $0x30] sm:$0xff]
      %v155 = vld [vmem:[%s139 + $0x38] sm:$0xff]
      %v156 = vld [vmem:[%s139 + $0x40] sm:$0xff]
      %v157 = vld [vmem:[%s139 + $0x48] sm:$0xff]
      %v158 = vld [vmem:[%s139 + $0x50] sm:$0xff]
      %v159 = vld [vmem:[%s139 + $0x58] sm:$0xff]
      %v160 = vld [vmem:[%s139 + $0x60] sm:$0xff]
      %v161 = vld [vmem:[%s139 + $0x68] sm:$0xff]
      %v162 = vld [vmem:[%s139 + $0x70] sm:$0xff]
      %v163 = vld [vmem:[%s139 + $0x78] sm:$0xff]
      %v164 = vld [vmem:[%s139 + $0x80] sm:$0xff]
      %v165 = vld [vmem:[%s139 + $0x88] sm:$0xff]
      %v166 = vld [vmem:[%s139 + $0x90] sm:$0xff]
      %v167 = vld [vmem:[%s139 + $0x98] sm:$0xff]
      %v168 = vld [vmem:[%s139 + $0xa0] sm:$0xff]
      %v169 = vld [vmem:[%s139 + $0xa8] sm:$0xff]
      %v170 = vld [vmem:[%s139 + $0xb0] sm:$0xff]
      %v171 = vld [vmem:[%s139 + $0xb8] sm:$0xff]
      %v172 = vld [vmem:[%s139 + $0xc0] sm:$0xff]
      %v173 = vld [vmem:[%s139 + $0xc8] sm:$0xff]
      %v174 = vld [vmem:[%s139 + $0xd0] sm:$0xff]
      %v175 = vld [vmem:[%s139 + $0xd8] sm:$0xff]
      %v176 = vld [vmem:[%s139 + $0xe0] sm:$0xff]
      %v177 = vld [vmem:[%s139 + $0xe8] sm:$0xff]
      %v178 = vld [vmem:[%s139 + $0xf0] sm:$0xff]
      %v179 = vld [vmem:[%s139 + $0xf8] sm:$0xff]
      %s180 = scalar_lea.vmem %s147, 768
      %vm181 = vcmask 31744
      %182 = vst.msk [vmem:[%s180] sm:$0xff] %vm181, %v148
      %183 = vst.msk [vmem:[%s180 + $0x8] sm:$0xff] %vm181, %v149
      %184 = vst.msk [vmem:[%s180 + $0x10] sm:$0xff] %vm181, %v150
      %185 = vst.msk [vmem:[%s180 + $0x18] sm:$0xff] %vm181, %v151
      %186 = vst.msk [vmem:[%s180 + $0x20] sm:$0xff] %vm181, %v152
      %187 = vst.msk [vmem:[%s180 + $0x28] sm:$0xff] %vm181, %v153
      %188 = vst.msk [vmem:[%s180 + $0x30] sm:$0xff] %vm181, %v154
      %189 = vst.msk [vmem:[%s180 + $0x38] sm:$0xff] %vm181, %v155
      %190 = vst.msk [vmem:[%s180 + $0x40] sm:$0xff] %vm181, %v156
      %191 = vst.msk [vmem:[%s180 + $0x48] sm:$0xff] %vm181, %v157
      %192 = vst.msk [vmem:[%s180 + $0x50] sm:$0xff] %vm181, %v158
      %193 = vst.msk [vmem:[%s180 + $0x58] sm:$0xff] %vm181, %v159
      %194 = vst.msk [vmem:[%s180 + $0x60] sm:$0xff] %vm181, %v160
      %195 = vst.msk [vmem:[%s180 + $0x68] sm:$0xff] %vm181, %v161
      %196 = vst.msk [vmem:[%s180 + $0x70] sm:$0xff] %vm181, %v162
      %197 = vst.msk [vmem:[%s180 + $0x78] sm:$0xff] %vm181, %v163
      %198 = vst.msk [vmem:[%s180 + $0x80] sm:$0xff] %vm181, %v164
      %199 = vst.msk [vmem:[%s180 + $0x88] sm:$0xff] %vm181, %v165
      %200 = vst.msk [vmem:[%s180 + $0x90] sm:$0xff] %vm181, %v166
      %201 = vst.msk [vmem:[%s180 + $0x98] sm:$0xff] %vm181, %v167
      %202 = vst.msk [vmem:[%s180 + $0xa0] sm:$0xff] %vm181, %v168
      %203 = vst.msk [vmem:[%s180 + $0xa8] sm:$0xff] %vm181, %v169
      %204 = vst.msk [vmem:[%s180 + $0xb0] sm:$0xff] %vm181, %v170
      %205 = vst.msk [vmem:[%s180 + $0xb8] sm:$0xff] %vm181, %v171
      %206 = vst.msk [vmem:[%s180 + $0xc0] sm:$0xff] %vm181, %v172
      %207 = vst.msk [vmem:[%s180 + $0xc8] sm:$0xff] %vm181, %v173
      %208 = vst.msk [vmem:[%s180 + $0xd0] sm:$0xff] %vm181, %v174
      %209 = vst.msk [vmem:[%s180 + $0xd8] sm:$0xff] %vm181, %v175
      %210 = vst.msk [vmem:[%s180 + $0xe0] sm:$0xff] %vm181, %v176
      %211 = vst.msk [vmem:[%s180 + $0xe8] sm:$0xff] %vm181, %v177
      %212 = vst.msk [vmem:[%s180 + $0xf0] sm:$0xff] %vm181, %v178
      %213 = vst.msk [vmem:[%s180 + $0xf8] sm:$0xff] %vm181, %v179
      %214 = vst.msk [vmem:[#allocation2] sm:$0xff] %vm181, -inf
      %215 = vst.msk [vmem:[#allocation2 + $0x8] sm:$0xff] %vm181, -inf
      %vm216 = vcmask 27648
      %217 = vst.msk [vmem:[#allocation2 + $0x10] sm:$0xf] %vm216, -inf
      %218 = vst.msk [vmem:[#allocation2 + $0x18] sm:$0xff] %vm181, -inf
      %219 = vst.msk [vmem:[#allocation2 + $0x20] sm:$0xff] %vm181, -inf
      %220 = vst.msk [vmem:[#allocation2 + $0x28] sm:$0xf] %vm216, -inf
      %221 = vst.msk [vmem:[#allocation2 + $0x30] sm:$0xff] %vm181, -inf
      %222 = vst.msk [vmem:[#allocation2 + $0x38] sm:$0xff] %vm181, -inf
      %223 = vst.msk [vmem:[#allocation2 + $0x40] sm:$0xf] %vm216, -inf
      %224 = vst.msk [vmem:[#allocation2 + $0x48] sm:$0xff] %vm181, -inf
      %225 = vst.msk [vmem:[#allocation2 + $0x50] sm:$0xff] %vm181, -inf
      %226 = vst.msk [vmem:[#allocation2 + $0x58] sm:$0xf] %vm216, -inf
      %227 = vst.msk [vmem:[#allocation2 + $0x60] sm:$0xff] %vm181, -inf
      %228 = vst.msk [vmem:[#allocation2 + $0x68] sm:$0xff] %vm181, -inf
      %229 = vst.msk [vmem:[#allocation2 + $0x70] sm:$0xf] %vm216, -inf
      %230 = vst.msk [vmem:[#allocation2 + $0x78] sm:$0xff] %vm181, -inf
      %231 = vst.msk [vmem:[#allocation2 + $0x80] sm:$0xff] %vm181, -inf
      %232 = vst.msk [vmem:[#allocation2 + $0x88] sm:$0xf] %vm216, -inf
      %233 = vst.msk [vmem:[#allocation2 + $0x90] sm:$0xff] %vm181, -inf
      %234 = vst.msk [vmem:[#allocation2 + $0x98] sm:$0xff] %vm181, -inf
      %235 = vst.msk [vmem:[#allocation2 + $0xa0] sm:$0xf] %vm216, -inf
      %236 = vst.msk [vmem:[#allocation2 + $0xa8] sm:$0xff] %vm181, -inf
      %237 = vst.msk [vmem:[#allocation2 + $0xb0] sm:$0xff] %vm181, -inf
      %238 = vst.msk [vmem:[#allocation2 + $0xb8] sm:$0xf] %vm216, -inf
      %239 = vst.msk [vmem:[#allocation2 + $0xc0] sm:$0xff] %vm181, -inf
      %240 = vst.msk [vmem:[#allocation2 + $0xc8] sm:$0xff] %vm181, -inf
      %241 = vst.msk [vmem:[#allocation2 + $0xd0] sm:$0xf] %vm216, -inf
      %242 = vst.msk [vmem:[#allocation2 + $0xd8] sm:$0xff] %vm181, -inf
      %243 = vst.msk [vmem:[#allocation2 + $0xe0] sm:$0xff] %vm181, -inf
      %244 = vst.msk [vmem:[#allocation2 + $0xe8] sm:$0xf] %vm216, -inf
      %245 = vst.msk [vmem:[#allocation2 + $0xf0] sm:$0xff] %vm181, -inf
      %246 = vst.msk [vmem:[#allocation2 + $0xf8] sm:$0xff] %vm181, -inf
      %247 = vst.msk [vmem:[#allocation2 + $0x100] sm:$0xf] %vm216, -inf
      %248 = vst.msk [vmem:[#allocation2 + $0x108] sm:$0xff] %vm181, -inf
      %249 = vst.msk [vmem:[#allocation2 + $0x110] sm:$0xff] %vm181, -inf
      %250 = vst.msk [vmem:[#allocation2 + $0x118] sm:$0xf] %vm216, -inf
      %251 = vst.msk [vmem:[#allocation2 + $0x120] sm:$0xff] %vm181, -inf
      %252 = vst.msk [vmem:[#allocation2 + $0x128] sm:$0xff] %vm181, -inf
      %253 = vst.msk [vmem:[#allocation2 + $0x130] sm:$0xf] %vm216, -inf
      %254 = vst.msk [vmem:[#allocation2 + $0x138] sm:$0xff] %vm181, -inf
      %255 = vst.msk [vmem:[#allocation2 + $0x140] sm:$0xff] %vm181, -inf
      %256 = vst.msk [vmem:[#allocation2 + $0x148] sm:$0xf] %vm216, -inf
      %257 = vst.msk [vmem:[#allocation2 + $0x150] sm:$0xff] %vm181, -inf
      %258 = vst.msk [vmem:[#allocation2 + $0x158] sm:$0xff] %vm181, -inf
      %259 = vst.msk [vmem:[#allocation2 + $0x160] sm:$0xf] %vm216, -inf
      %260 = vst.msk [vmem:[#allocation2 + $0x168] sm:$0xff] %vm181, -inf
      %261 = vst.msk [vmem:[#allocation2 + $0x170] sm:$0xff] %vm181, -inf
      %262 = vst.msk [vmem:[#allocation2 + $0x178] sm:$0xf] %vm216, -inf
      %263 = vst.msk [vmem:[#allocation2 + $0x180] sm:$0xff] %vm181, -inf
      %264 = vst.msk [vmem:[#allocation2 + $0x188] sm:$0xff] %vm181, -inf
      %265 = vst.msk [vmem:[#allocation2 + $0x190] sm:$0xf] %vm216, -inf
      %266 = vst.msk [vmem:[#allocation2 + $0x198] sm:$0xff] %vm181, -inf
      %267 = vst.msk [vmem:[#allocation2 + $0x1a0] sm:$0xff] %vm181, -inf
      %268 = vst.msk [vmem:[#allocation2 + $0x1a8] sm:$0xf] %vm216, -inf
      %269 = vst.msk [vmem:[#allocation2 + $0x1b0] sm:$0xff] %vm181, -inf
      %270 = vst.msk [vmem:[#allocation2 + $0x1b8] sm:$0xff] %vm181, -inf
      %271 = vst.msk [vmem:[#allocation2 + $0x1c0] sm:$0xf] %vm216, -inf
      %272 = vst.msk [vmem:[#allocation2 + $0x1c8] sm:$0xff] %vm181, -inf
      %273 = vst.msk [vmem:[#allocation2 + $0x1d0] sm:$0xff] %vm181, -inf
      %274 = vst.msk [vmem:[#allocation2 + $0x1d8] sm:$0xf] %vm216, -inf
      %s275 = scalar_lea.vmem [#allocation2], 48
      %276 = vst.msk [vmem:[%s275 + $0x2] sm:$0xff] %vm181, %v148
      %277 = vst.msk [vmem:[%s275 + $0xa] sm:$0xff] %vm181, %v149
      %278 = vst.msk [vmem:[%s275 + $0x1a] sm:$0xff] %vm181, %v150
      %279 = vst.msk [vmem:[%s275 + $0x22] sm:$0xff] %vm181, %v151
      %280 = vst.msk [vmem:[%s275 + $0x32] sm:$0xff] %vm181, %v152
      %281 = vst.msk [vmem:[%s275 + $0x3a] sm:$0xff] %vm181, %v153
      %282 = vst.msk [vmem:[%s275 + $0x4a] sm:$0xff] %vm181, %v154
      %283 = vst.msk [vmem:[%s275 + $0x52] sm:$0xff] %vm181, %v155
      %284 = vst.msk [vmem:[%s275 + $0x62] sm:$0xff] %vm181, %v156
      %285 = vst.msk [vmem:[%s275 + $0x6a] sm:$0xff] %vm181, %v157
      %286 = vst.msk [vmem:[%s275 + $0x7a] sm:$0xff] %vm181, %v158
      %287 = vst.msk [vmem:[%s275 + $0x82] sm:$0xff] %vm181, %v159
      %288 = vst.msk [vmem:[%s275 + $0x92] sm:$0xff] %vm181, %v160
      %289 = vst.msk [vmem:[%s275 + $0x9a] sm:$0xff] %vm181, %v161
      %290 = vst.msk [vmem:[%s275 + $0xaa] sm:$0xff] %vm181, %v162
      %291 = vst.msk [vmem:[%s275 + $0xb2] sm:$0xff] %vm181, %v163
      %292 = vst.msk [vmem:[%s275 + $0xc2] sm:$0xff] %vm181, %v164
      %293 = vst.msk [vmem:[%s275 + $0xca] sm:$0xff] %vm181, %v165
      %294 = vst.msk [vmem:[%s275 + $0xda] sm:$0xff] %vm181, %v166
      %295 = vst.msk [vmem:[%s275 + $0xe2] sm:$0xff] %vm181, %v167
      %296 = vst.msk [vmem:[%s275 + $0xf2] sm:$0xff] %vm181, %v168
      %297 = vst.msk [vmem:[%s275 + $0xfa] sm:$0xff] %vm181, %v169
      %298 = vst.msk [vmem:[%s275 + $0x10a] sm:$0xff] %vm181, %v170
      %299 = vst.msk [vmem:[%s275 + $0x112] sm:$0xff] %vm181, %v171
      %300 = vst.msk [vmem:[%s275 + $0x122] sm:$0xff] %vm181, %v172
      %301 = vst.msk [vmem:[%s275 + $0x12a] sm:$0xff] %vm181, %v173
      %302 = vst.msk [vmem:[%s275 + $0x13a] sm:$0xff] %vm181, %v174
      %303 = vst.msk [vmem:[%s275 + $0x142] sm:$0xff] %vm181, %v175
      %304 = vst.msk [vmem:[%s275 + $0x152] sm:$0xff] %vm181, %v176
      %305 = vst.msk [vmem:[%s275 + $0x15a] sm:$0xff] %vm181, %v177
      %306 = vst.msk [vmem:[%s275 + $0x16a] sm:$0xff] %vm181, %v178
      %307 = vst.msk [vmem:[%s275 + $0x172] sm:$0xff] %vm181, %v179
      %v308 = vld [vmem:[#allocation2] sm:$0xff]
      %v309 = vld [vmem:[#allocation2 + $0x8] sm:$0xff]
      %v310 = vld [vmem:[#allocation2 + $0x10] sm:$0xf]
      %v311 = vld [vmem:[#allocation2 + $0x18] sm:$0xff]
      %v312 = vld [vmem:[#allocation2 + $0x20] sm:$0xff]
      %v313 = vld [vmem:[#allocation2 + $0x28] sm:$0xf]
      %v314 = vld [vmem:[#allocation2 + $0x30] sm:$0xff]
      %v315 = vld [vmem:[#allocation2 + $0x38] sm:$0xff]
      %v316 = vld [vmem:[#allocation2 + $0x40] sm:$0xf]
      %v317 = vld [vmem:[#allocation2 + $0x48] sm:$0xff]
      %v318 = vld [vmem:[#allocation2 + $0x50] sm:$0xff]
      %v319 = vld [vmem:[#allocation2 + $0x58] sm:$0xf]
      %v320 = vld [vmem:[#allocation2 + $0x60] sm:$0xff]
      %v321 = vld [vmem:[#allocation2 + $0x68] sm:$0xff]
      %v322 = vld [vmem:[#allocation2 + $0x70] sm:$0xf]
      %v323 = vld [vmem:[#allocation2 + $0x78] sm:$0xff]
      %v324 = vld [vmem:[#allocation2 + $0x80] sm:$0xff]
      %v325 = vld [vmem:[#allocation2 + $0x88] sm:$0xf]
      %v326 = vld [vmem:[#allocation2 + $0x90] sm:$0xff]
      %v327 = vld [vmem:[#allocation2 + $0x98] sm:$0xff]
      %v328 = vld [vmem:[#allocation2 + $0xa0] sm:$0xf]
      %v329 = vld [vmem:[#allocation2 + $0xa8] sm:$0xff]
      %v330 = vld [vmem:[#allocation2 + $0xb0] sm:$0xff]
      %v331 = vld [vmem:[#allocation2 + $0xb8] sm:$0xf]
      %v332 = vld [vmem:[#allocation2 + $0xc0] sm:$0xff]
      %v333 = vld [vmem:[#allocation2 + $0xc8] sm:$0xff]
      %v334 = vld [vmem:[#allocation2 + $0xd0] sm:$0xf]
      %v335 = vld [vmem:[#allocation2 + $0xd8] sm:$0xff]
      %v336 = vld [vmem:[#allocation2 + $0xe0] sm:$0xff]
      %v337 = vld [vmem:[#allocation2 + $0xe8] sm:$0xf]
      %v338 = vld [vmem:[#allocation2 + $0xf0] sm:$0xff]
      %v339 = vld [vmem:[#allocation2 + $0xf8] sm:$0xff]
      %v340 = vld [vmem:[#allocation2 + $0x100] sm:$0xf]
      %v341 = vld [vmem:[#allocation2 + $0x108] sm:$0xff]
      %v342 = vld [vmem:[#allocation2 + $0x110] sm:$0xff]
      %v343 = vld [vmem:[#allocation2 + $0x118] sm:$0xf]
      %v344 = vld [vmem:[#allocation2 + $0x120] sm:$0xff]
      %v345 = vld [vmem:[#allocation2 + $0x128] sm:$0xff]
      %v346 = vld [vmem:[#allocation2 + $0x130] sm:$0xf]
      %v347 = vld [vmem:[#allocation2 + $0x138] sm:$0xff]
      %v348 = vld [vmem:[#allocation2 + $0x140] sm:$0xff]
      %v349 = vld [vmem:[#allocation2 + $0x148] sm:$0xf]
      %v350 = vld [vmem:[#allocation2 + $0x150] sm:$0xff]
      %v351 = vld [vmem:[#allocation2 + $0x158] sm:$0xff]
      %v352 = vld [vmem:[#allocation2 + $0x160] sm:$0xf]
      %v353 = vld [vmem:[#allocation2 + $0x168] sm:$0xff]
      %v354 = vld [vmem:[#allocation2 + $0x170] sm:$0xff]
      %v355 = vld [vmem:[#allocation2 + $0x178] sm:$0xf]
      %v356 = vld [vmem:[#allocation2 + $0x180] sm:$0xff]
      %v357 = vld [vmem:[#allocation2 + $0x188] sm:$0xff]
      %v358 = vld [vmem:[#allocation2 + $0x190] sm:$0xf]
      %v359 = vld [vmem:[#allocation2 + $0x198] sm:$0xff]
      %v360 = vld [vmem:[#allocation2 + $0x1a0] sm:$0xff]
      %v361 = vld [vmem:[#allocation2 + $0x1a8] sm:$0xf]
      %v362 = vld [vmem:[#allocation2 + $0x1b0] sm:$0xff]
      %v363 = vld [vmem:[#allocation2 + $0x1b8] sm:$0xff]
      %v364 = vld [vmem:[#allocation2 + $0x1c0] sm:$0xf]
      %v365 = vld [vmem:[#allocation2 + $0x1c8] sm:$0xff]
      %v366 = vld [vmem:[#allocation2 + $0x1d0] sm:$0xff]
      %v367 = vld [vmem:[#allocation2 + $0x1d8] sm:$0xf]
      %v368 = vmax.f32 %v308, %v311
      %v369 = vmax.f32 %v309, %v312
      %v370 = vmax.f32 %v310, %v313
      %v371 = vmax.f32 %v311, %v314
      %v372 = vmax.f32 %v312, %v315
      %v373 = vmax.f32 %v313, %v316
      %v374 = vmax.f32 %v314, %v317
      %v375 = vmax.f32 %v315, %v318
      %v376 = vmax.f32 %v316, %v319
      %v377 = vmax.f32 %v317, %v320
      %v378 = vmax.f32 %v318, %v321
      %v379 = vmax.f32 %v319, %v322
      %v380 = vmax.f32 %v320, %v323
      %v381 = vmax.f32 %v321, %v324
      %v382 = vmax.f32 %v322, %v325
      %v383 = vmax.f32 %v323, %v326
      %v384 = vmax.f32 %v324, %v327
      %v385 = vmax.f32 %v325, %v328
      %v386 = vmax.f32 %v326, %v329
      %v387 = vmax.f32 %v327, %v330
      %v388 = vmax.f32 %v328, %v331
      %v389 = vmax.f32 %v329, %v332
      %v390 = vmax.f32 %v330, %v333
      %v391 = vmax.f32 %v331, %v334
      %v392 = vmax.f32 %v332, %v335
      %v393 = vmax.f32 %v333, %v336
      %v394 = vmax.f32 %v334, %v337
      %v395 = vmax.f32 %v335, %v338
      %v396 = vmax.f32 %v336, %v339
      %v397 = vmax.f32 %v337, %v340
      %v398 = vmax.f32 %v338, %v341
      %v399 = vmax.f32 %v339, %v342
      %v400 = vmax.f32 %v340, %v343
      %v401 = vmax.f32 %v341, %v344
      %v402 = vmax.f32 %v342, %v345
      %v403 = vmax.f32 %v343, %v346
      %v404 = vmax.f32 %v344, %v347
      %v405 = vmax.f32 %v345, %v348
      %v406 = vmax.f32 %v346, %v349
      %v407 = vmax.f32 %v347, %v350
      %v408 = vmax.f32 %v348, %v351
      %v409 = vmax.f32 %v349, %v352
      %v410 = vmax.f32 %v350, %v353
      %v411 = vmax.f32 %v351, %v354
      %v412 = vmax.f32 %v352, %v355
      %v413 = vmax.f32 %v353, %v356
      %v414 = vmax.f32 %v354, %v357
      %v415 = vmax.f32 %v355, %v358
      %v416 = vmax.f32 %v368, %v314
      %v417 = vmax.f32 %v369, %v315
      %v418 = vmax.f32 %v370, %v316
      %v419 = vmax.f32 %v371, %v317
      %v420 = vmax.f32 %v372, %v318
      %v421 = vmax.f32 %v373, %v319
      %v422 = vmax.f32 %v374, %v320
      %v423 = vmax.f32 %v375, %v321
      %v424 = vmax.f32 %v376, %v322
      %v425 = vmax.f32 %v377, %v323
      %v426 = vmax.f32 %v378, %v324
      %v427 = vmax.f32 %v379, %v325
      %v428 = vmax.f32 %v380, %v326
      %v429 = vmax.f32 %v381, %v327
      %v430 = vmax.f32 %v382, %v328
      %v431 = vmax.f32 %v383, %v329
      %v432 = vmax.f32 %v384, %v330
      %v433 = vmax.f32 %v385, %v331
      %v434 = vmax.f32 %v386, %v332
      %v435 = vmax.f32 %v387, %v333
      %v436 = vmax.f32 %v388, %v334
      %v437 = vmax.f32 %v389, %v335
      %v438 = vmax.f32 %v390, %v336
      %v439 = vmax.f32 %v391, %v337
      %v440 = vmax.f32 %v392, %v338
      %v441 = vmax.f32 %v393, %v339
      %v442 = vmax.f32 %v394, %v340
      %v443 = vmax.f32 %v395, %v341
      %v444 = vmax.f32 %v396, %v342
      %v445 = vmax.f32 %v397, %v343
      %v446 = vmax.f32 %v398, %v344
      %v447 = vmax.f32 %v399, %v345
      %v448 = vmax.f32 %v400, %v346
      %v449 = vmax.f32 %v401, %v347
      %v450 = vmax.f32 %v402, %v348
      %v451 = vmax.f32 %v403, %v349
      %v452 = vmax.f32 %v404, %v350
      %v453 = vmax.f32 %v405, %v351
      %v454 = vmax.f32 %v406, %v352
      %v455 = vmax.f32 %v407, %v353
      %v456 = vmax.f32 %v408, %v354
      %v457 = vmax.f32 %v409, %v355
      %v458 = vmax.f32 %v410, %v356
      %v459 = vmax.f32 %v411, %v357
      %v460 = vmax.f32 %v412, %v358
      %v461 = vmax.f32 %v413, %v359
      %v462 = vmax.f32 %v414, %v360
      %v463 = vmax.f32 %v415, %v361
      %v464 = vmax.f32 %v416, %v317
      %v465 = vmax.f32 %v417, %v318
      %v466 = vmax.f32 %v418, %v319
      %v467 = vmax.f32 %v419, %v320
      %v468 = vmax.f32 %v420, %v321
      %v469 = vmax.f32 %v421, %v322
      %v470 = vmax.f32 %v422, %v323
      %v471 = vmax.f32 %v423, %v324
      %v472 = vmax.f32 %v424, %v325
      %v473 = vmax.f32 %v425, %v326
      %v474 = vmax.f32 %v426, %v327
      %v475 = vmax.f32 %v427, %v328
      %v476 = vmax.f32 %v428, %v329
      %v477 = vmax.f32 %v429, %v330
      %v478 = vmax.f32 %v430, %v331
      %v479 = vmax.f32 %v431, %v332
      %v480 = vmax.f32 %v432, %v333
      %v481 = vmax.f32 %v433, %v334
      %v482 = vmax.f32 %v434, %v335
      %v483 = vmax.f32 %v435, %v336
      %v484 = vmax.f32 %v436, %v337
      %v485 = vmax.f32 %v437, %v338
      %v486 = vmax.f32 %v438, %v339
      %v487 = vmax.f32 %v439, %v340
      %v488 = vmax.f32 %v440, %v341
      %v489 = vmax.f32 %v441, %v342
      %v490 = vmax.f32 %v442, %v343
      %v491 = vmax.f32 %v443, %v344
      %v492 = vmax.f32 %v444, %v345
      %v493 = vmax.f32 %v445, %v346
      %v494 = vmax.f32 %v446, %v347
      %v495 = vmax.f32 %v447, %v348
      %v496 = vmax.f32 %v448, %v349
      %v497 = vmax.f32 %v449, %v350
      %v498 = vmax.f32 %v450, %v351
      %v499 = vmax.f32 %v451, %v352
      %v500 = vmax.f32 %v452, %v353
      %v501 = vmax.f32 %v453, %v354
      %v502 = vmax.f32 %v454, %v355
      %v503 = vmax.f32 %v455, %v356
      %v504 = vmax.f32 %v456, %v357
      %v505 = vmax.f32 %v457, %v358
      %v506 = vmax.f32 %v458, %v359
      %v507 = vmax.f32 %v459, %v360
      %v508 = vmax.f32 %v460, %v361
      %v509 = vmax.f32 %v461, %v362
      %v510 = vmax.f32 %v462, %v363
      %v511 = vmax.f32 %v463, %v364
      %v512 = vmax.f32 %v464, %v320
      %v513 = vmax.f32 %v465, %v321
      %v514 = vmax.f32 %v466, %v322
      %v515 = vmax.f32 %v467, %v323
      %v516 = vmax.f32 %v468, %v324
      %v517 = vmax.f32 %v469, %v325
      %v518 = vmax.f32 %v470, %v326
      %v519 = vmax.f32 %v471, %v327
      %v520 = vmax.f32 %v472, %v328
      %v521 = vmax.f32 %v473, %v329
      %v522 = vmax.f32 %v474, %v330
      %v523 = vmax.f32 %v475, %v331
      %v524 = vmax.f32 %v476, %v332
      %v525 = vmax.f32 %v477, %v333
      %v526 = vmax.f32 %v478, %v334
      %v527 = vmax.f32 %v479, %v335
      %v528 = vmax.f32 %v480, %v336
      %v529 = vmax.f32 %v481, %v337
      %v530 = vmax.f32 %v482, %v338
      %v531 = vmax.f32 %v483, %v339
      %v532 = vmax.f32 %v484, %v340
      %v533 = vmax.f32 %v485, %v341
      %v534 = vmax.f32 %v486, %v342
      %v535 = vmax.f32 %v487, %v343
      %v536 = vmax.f32 %v488, %v344
      %v537 = vmax.f32 %v489, %v345
      %v538 = vmax.f32 %v490, %v346
      %v539 = vmax.f32 %v491, %v347
      %v540 = vmax.f32 %v492, %v348
      %v541 = vmax.f32 %v493, %v349
      %v542 = vmax.f32 %v494, %v350
      %v543 = vmax.f32 %v495, %v351
      %v544 = vmax.f32 %v496, %v352
      %v545 = vmax.f32 %v497, %v353
      %v546 = vmax.f32 %v498, %v354
      %v547 = vmax.f32 %v499, %v355
      %v548 = vmax.f32 %v500, %v356
      %v549 = vmax.f32 %v501, %v357
      %v550 = vmax.f32 %v502, %v358
      %v551 = vmax.f32 %v503, %v359
      %v552 = vmax.f32 %v504, %v360
      %v553 = vmax.f32 %v505, %v361
      %v554 = vmax.f32 %v506, %v362
      %v555 = vmax.f32 %v507, %v363
      %v556 = vmax.f32 %v508, %v364
      %v557 = vmax.f32 %v509, %v365
      %v558 = vmax.f32 %v510, %v366
      %v559 = vmax.f32 %v511, %v367
      %vm608 = vcmask 1046528
      %v609 = vrot.slane %v512, 1
      %v610 = vrot.slane %v513, 1
      %v611 = vsel %vm608, %v609, %v610
      %v612 = vrot.slane %v514, 1
      %v613 = vsel %vm608, %v610, %v612
      %v614 = vrot.slane %v515, 1
      %v615 = vrot.slane %v516, 1
      %v616 = vsel %vm608, %v614, %v615
      %v617 = vrot.slane %v517, 1
      %v618 = vsel %vm608, %v615, %v617
      %v619 = vrot.slane %v518, 1
      %v620 = vrot.slane %v519, 1
      %v621 = vsel %vm608, %v619, %v620
      %v622 = vrot.slane %v520, 1
      %v623 = vsel %vm608, %v620, %v622
      %v624 = vrot.slane %v521, 1
      %v625 = vrot.slane %v522, 1
      %v626 = vsel %vm608, %v624, %v625
      %v627 = vrot.slane %v523, 1
      %v628 = vsel %vm608, %v625, %v627
      %v629 = vrot.slane %v524, 1
      %v630 = vrot.slane %v525, 1
      %v631 = vsel %vm608, %v629, %v630
      %v632 = vrot.slane %v526, 1
      %v633 = vsel %vm608, %v630, %v632
      %v634 = vrot.slane %v527, 1
      %v635 = vrot.slane %v528, 1
      %v636 = vsel %vm608, %v634, %v635
      %v637 = vrot.slane %v529, 1
      %v638 = vsel %vm608, %v635, %v637
      %v639 = vrot.slane %v530, 1
      %v640 = vrot.slane %v531, 1
      %v641 = vsel %vm608, %v639, %v640
      %v642 = vrot.slane %v532, 1
      %v643 = vsel %vm608, %v640, %v642
      %v644 = vrot.slane %v533, 1
      %v645 = vrot.slane %v534, 1
      %v646 = vsel %vm608, %v644, %v645
      %v647 = vrot.slane %v535, 1
      %v648 = vsel %vm608, %v645, %v647
      %v649 = vrot.slane %v536, 1
      %v650 = vrot.slane %v537, 1
      %v651 = vsel %vm608, %v649, %v650
      %v652 = vrot.slane %v538, 1
      %v653 = vsel %vm608, %v650, %v652
      %v654 = vrot.slane %v539, 1
      %v655 = vrot.slane %v540, 1
      %v656 = vsel %vm608, %v654, %v655
      %v657 = vrot.slane %v541, 1
      %v658 = vsel %vm608, %v655, %v657
      %v659 = vrot.slane %v542, 1
      %v660 = vrot.slane %v543, 1
      %v661 = vsel %vm608, %v659, %v660
      %v662 = vrot.slane %v544, 1
      %v663 = vsel %vm608, %v660, %v662
      %v664 = vrot.slane %v545, 1
      %v665 = vrot.slane %v546, 1
      %v666 = vsel %vm608, %v664, %v665
      %v667 = vrot.slane %v547, 1
      %v668 = vsel %vm608, %v665, %v667
      %v669 = vrot.slane %v548, 1
      %v670 = vrot.slane %v549, 1
      %v671 = vsel %vm608, %v669, %v670
      %v672 = vrot.slane %v550, 1
      %v673 = vsel %vm608, %v670, %v672
      %v674 = vrot.slane %v551, 1
      %v675 = vrot.slane %v552, 1
      %v676 = vsel %vm608, %v674, %v675
      %v677 = vrot.slane %v553, 1
      %v678 = vsel %vm608, %v675, %v677
      %v679 = vrot.slane %v554, 1
      %v680 = vrot.slane %v555, 1
      %v681 = vsel %vm608, %v679, %v680
      %v682 = vrot.slane %v556, 1
      %v683 = vsel %vm608, %v680, %v682
      %v684 = vrot.slane %v557, 1
      %v685 = vrot.slane %v558, 1
      %v686 = vsel %vm608, %v684, %v685
      %v687 = vrot.slane %v559, 1
      %v688 = vsel %vm608, %v685, %v687
      %v721 = vmax.f32 %v512, %v611
      %v722 = vmax.f32 %v513, %v613
      %v723 = vmax.f32 %v515, %v616
      %v724 = vmax.f32 %v516, %v618
      %v725 = vmax.f32 %v518, %v621
      %v726 = vmax.f32 %v519, %v623
      %v727 = vmax.f32 %v521, %v626
      %v728 = vmax.f32 %v522, %v628
      %v729 = vmax.f32 %v524, %v631
      %v730 = vmax.f32 %v525, %v633
      %v731 = vmax.f32 %v527, %v636
      %v732 = vmax.f32 %v528, %v638
      %v733 = vmax.f32 %v530, %v641
      %v734 = vmax.f32 %v531, %v643
      %v735 = vmax.f32 %v533, %v646
      %v736 = vmax.f32 %v534, %v648
      %v737 = vmax.f32 %v536, %v651
      %v738 = vmax.f32 %v537, %v653
      %v739 = vmax.f32 %v539, %v656
      %v740 = vmax.f32 %v540, %v658
      %v741 = vmax.f32 %v542, %v661
      %v742 = vmax.f32 %v543, %v663
      %v743 = vmax.f32 %v545, %v666
      %v744 = vmax.f32 %v546, %v668
      %v745 = vmax.f32 %v548, %v671
      %v746 = vmax.f32 %v549, %v673
      %v747 = vmax.f32 %v551, %v676
      %v748 = vmax.f32 %v552, %v678
      %v749 = vmax.f32 %v554, %v681
      %v750 = vmax.f32 %v555, %v683
      %v751 = vmax.f32 %v557, %v686
      %v752 = vmax.f32 %v558, %v688
      %vm753 = vcmask 1045504
      %v754 = vrot.slane %v512, 2
      %v755 = vrot.slane %v513, 2
      %v756 = vsel %vm753, %v754, %v755
      %v757 = vrot.slane %v514, 2
      %v758 = vsel %vm753, %v755, %v757
      %v759 = vrot.slane %v515, 2
      %v760 = vrot.slane %v516, 2
      %v761 = vsel %vm753, %v759, %v760
      %v762 = vrot.slane %v517, 2
      %v763 = vsel %vm753, %v760, %v762
      %v764 = vrot.slane %v518, 2
      %v765 = vrot.slane %v519, 2
      %v766 = vsel %vm753, %v764, %v765
      %v767 = vrot.slane %v520, 2
      %v768 = vsel %vm753, %v765, %v767
      %v769 = vrot.slane %v521, 2
      %v770 = vrot.slane %v522, 2
      %v771 = vsel %vm753, %v769, %v770
      %v772 = vrot.slane %v523, 2
      %v773 = vsel %vm753, %v770, %v772
      %v774 = vrot.slane %v524, 2
      %v775 = vrot.slane %v525, 2
      %v776 = vsel %vm753, %v774, %v775
      %v777 = vrot.slane %v526, 2
      %v778 = vsel %vm753, %v775, %v777
      %v779 = vrot.slane %v527, 2
      %v780 = vrot.slane %v528, 2
      %v781 = vsel %vm753, %v779, %v780
      %v782 = vrot.slane %v529, 2
      %v783 = vsel %vm753, %v780, %v782
      %v784 = vrot.slane %v530, 2
      %v785 = vrot.slane %v531, 2
      %v786 = vsel %vm753, %v784, %v785
      %v787 = vrot.slane %v532, 2
      %v788 = vsel %vm753, %v785, %v787
      %v789 = vrot.slane %v533, 2
      %v790 = vrot.slane %v534, 2
      %v791 = vsel %vm753, %v789, %v790
      %v792 = vrot.slane %v535, 2
      %v793 = vsel %vm753, %v790, %v792
      %v794 = vrot.slane %v536, 2
      %v795 = vrot.slane %v537, 2
      %v796 = vsel %vm753, %v794, %v795
      %v797 = vrot.slane %v538, 2
      %v798 = vsel %vm753, %v795, %v797
      %v799 = vrot.slane %v539, 2
      %v800 = vrot.slane %v540, 2
      %v801 = vsel %vm753, %v799, %v800
      %v802 = vrot.slane %v541, 2
      %v803 = vsel %vm753, %v800, %v802
      %v804 = vrot.slane %v542, 2
      %v805 = vrot.slane %v543, 2
      %v806 = vsel %vm753, %v804, %v805
      %v807 = vrot.slane %v544, 2
      %v808 = vsel %vm753, %v805, %v807
      %v809 = vrot.slane %v545, 2
      %v810 = vrot.slane %v546, 2
      %v811 = vsel %vm753, %v809, %v810
      %v812 = vrot.slane %v547, 2
      %v813 = vsel %vm753, %v810, %v812
      %v814 = vrot.slane %v548, 2
      %v815 = vrot.slane %v549, 2
      %v816 = vsel %vm753, %v814, %v815
      %v817 = vrot.slane %v550, 2
      %v818 = vsel %vm753, %v815, %v817
      %v819 = vrot.slane %v551, 2
      %v820 = vrot.slane %v552, 2
      %v821 = vsel %vm753, %v819, %v820
      %v822 = vrot.slane %v553, 2
      %v823 = vsel %vm753, %v820, %v822
      %v824 = vrot.slane %v554, 2
      %v825 = vrot.slane %v555, 2
      %v826 = vsel %vm753, %v824, %v825
      %v827 = vrot.slane %v556, 2
      %v828 = vsel %vm753, %v825, %v827
      %v829 = vrot.slane %v557, 2
      %v830 = vrot.slane %v558, 2
      %v831 = vsel %vm753, %v829, %v830
      %v832 = vrot.slane %v559, 2
      %v833 = vsel %vm753, %v830, %v832
      %v866 = vmax.f32 %v721, %v756
      %v867 = vmax.f32 %v722, %v758
      %v868 = vmax.f32 %v723, %v761
      %v869 = vmax.f32 %v724, %v763
      %v870 = vmax.f32 %v725, %v766
      %v871 = vmax.f32 %v726, %v768
      %v872 = vmax.f32 %v727, %v771
      %v873 = vmax.f32 %v728, %v773
      %v874 = vmax.f32 %v729, %v776
      %v875 = vmax.f32 %v730, %v778
      %v876 = vmax.f32 %v731, %v781
      %v877 = vmax.f32 %v732, %v783
      %v878 = vmax.f32 %v733, %v786
      %v879 = vmax.f32 %v734, %v788
      %v880 = vmax.f32 %v735, %v791
      %v881 = vmax.f32 %v736, %v793
      %v882 = vmax.f32 %v737, %v796
      %v883 = vmax.f32 %v738, %v798
      %v884 = vmax.f32 %v739, %v801
      %v885 = vmax.f32 %v740, %v803
      %v886 = vmax.f32 %v741, %v806
      %v887 = vmax.f32 %v742, %v808
      %v888 = vmax.f32 %v743, %v811
      %v889 = vmax.f32 %v744, %v813
      %v890 = vmax.f32 %v745, %v816
      %v891 = vmax.f32 %v746, %v818
      %v892 = vmax.f32 %v747, %v821
      %v893 = vmax.f32 %v748, %v823
      %v894 = vmax.f32 %v749, %v826
      %v895 = vmax.f32 %v750, %v828
      %v896 = vmax.f32 %v751, %v831
      %v897 = vmax.f32 %v752, %v833
      %vm898 = vcmask 1044480
      %v899 = vrot.slane %v512, 3
      %v900 = vrot.slane %v513, 3
      %v901 = vsel %vm898, %v899, %v900
      %v902 = vrot.slane %v514, 3
      %v903 = vsel %vm898, %v900, %v902
      %v904 = vrot.slane %v515, 3
      %v905 = vrot.slane %v516, 3
      %v906 = vsel %vm898, %v904, %v905
      %v907 = vrot.slane %v517, 3
      %v908 = vsel %vm898, %v905, %v907
      %v909 = vrot.slane %v518, 3
      %v910 = vrot.slane %v519, 3
      %v911 = vsel %vm898, %v909, %v910
      %v912 = vrot.slane %v520, 3
      %v913 = vsel %vm898, %v910, %v912
      %v914 = vrot.slane %v521, 3
      %v915 = vrot.slane %v522, 3
      %v916 = vsel %vm898, %v914, %v915
      %v917 = vrot.slane %v523, 3
      %v918 = vsel %vm898, %v915, %v917
      %v919 = vrot.slane %v524, 3
      %v920 = vrot.slane %v525, 3
      %v921 = vsel %vm898, %v919, %v920
      %v922 = vrot.slane %v526, 3
      %v923 = vsel %vm898, %v920, %v922
      %v924 = vrot.slane %v527, 3
      %v925 = vrot.slane %v528, 3
      %v926 = vsel %vm898, %v924, %v925
      %v927 = vrot.slane %v529, 3
      %v928 = vsel %vm898, %v925, %v927
      %v929 = vrot.slane %v530, 3
      %v930 = vrot.slane %v531, 3
      %v931 = vsel %vm898, %v929, %v930
      %v932 = vrot.slane %v532, 3
      %v933 = vsel %vm898, %v930, %v932
      %v934 = vrot.slane %v533, 3
      %v935 = vrot.slane %v534, 3
      %v936 = vsel %vm898, %v934, %v935
      %v937 = vrot.slane %v535, 3
      %v938 = vsel %vm898, %v935, %v937
      %v939 = vrot.slane %v536, 3
      %v940 = vrot.slane %v537, 3
      %v941 = vsel %vm898, %v939, %v940
      %v942 = vrot.slane %v538, 3
      %v943 = vsel %vm898, %v940, %v942
      %v944 = vrot.slane %v539, 3
      %v945 = vrot.slane %v540, 3
      %v946 = vsel %vm898, %v944, %v945
      %v947 = vrot.slane %v541, 3
      %v948 = vsel %vm898, %v945, %v947
      %v949 = vrot.slane %v542, 3
      %v950 = vrot.slane %v543, 3
      %v951 = vsel %vm898, %v949, %v950
      %v952 = vrot.slane %v544, 3
      %v953 = vsel %vm898, %v950, %v952
      %v954 = vrot.slane %v545, 3
      %v955 = vrot.slane %v546, 3
      %v956 = vsel %vm898, %v954, %v955
      %v957 = vrot.slane %v547, 3
      %v958 = vsel %vm898, %v955, %v957
      %v959 = vrot.slane %v548, 3
      %v960 = vrot.slane %v549, 3
      %v961 = vsel %vm898, %v959, %v960
      %v962 = vrot.slane %v550, 3
      %v963 = vsel %vm898, %v960, %v962
      %v964 = vrot.slane %v551, 3
      %v965 = vrot.slane %v552, 3
      %v966 = vsel %vm898, %v964, %v965
      %v967 = vrot.slane %v553, 3
      %v968 = vsel %vm898, %v965, %v967
      %v969 = vrot.slane %v554, 3
      %v970 = vrot.slane %v555, 3
      %v971 = vsel %vm898, %v969, %v970
      %v972 = vrot.slane %v556, 3
      %v973 = vsel %vm898, %v970, %v972
      %v974 = vrot.slane %v557, 3
      %v975 = vrot.slane %v558, 3
      %v976 = vsel %vm898, %v974, %v975
      %v977 = vrot.slane %v559, 3
      %v978 = vsel %vm898, %v975, %v977
      %v1011 = vmax.f32 %v866, %v901
      %v1012 = vmax.f32 %v867, %v903
      %v1013 = vmax.f32 %v868, %v906
      %v1014 = vmax.f32 %v869, %v908
      %v1015 = vmax.f32 %v870, %v911
      %v1016 = vmax.f32 %v871, %v913
      %v1017 = vmax.f32 %v872, %v916
      %v1018 = vmax.f32 %v873, %v918
      %v1019 = vmax.f32 %v874, %v921
      %v1020 = vmax.f32 %v875, %v923
      %v1021 = vmax.f32 %v876, %v926
      %v1022 = vmax.f32 %v877, %v928
      %v1023 = vmax.f32 %v878, %v931
      %v1024 = vmax.f32 %v879, %v933
      %v1025 = vmax.f32 %v880, %v936
      %v1026 = vmax.f32 %v881, %v938
      %v1027 = vmax.f32 %v882, %v941
      %v1028 = vmax.f32 %v883, %v943
      %v1029 = vmax.f32 %v884, %v946
      %v1030 = vmax.f32 %v885, %v948
      %v1031 = vmax.f32 %v886, %v951
      %v1032 = vmax.f32 %v887, %v953
      %v1033 = vmax.f32 %v888, %v956
      %v1034 = vmax.f32 %v889, %v958
      %v1035 = vmax.f32 %v890, %v961
      %v1036 = vmax.f32 %v891, %v963
      %v1037 = vmax.f32 %v892, %v966
      %v1038 = vmax.f32 %v893, %v968
      %v1039 = vmax.f32 %v894, %v971
      %v1040 = vmax.f32 %v895, %v973
      %v1041 = vmax.f32 %v896, %v976
      %v1042 = vmax.f32 %v897, %v978
      %vm1043 = vcmask 1043456
      %v1044 = vrot.slane %v512, 4
      %v1045 = vrot.slane %v513, 4
      %v1046 = vsel %vm1043, %v1044, %v1045
      %v1047 = vrot.slane %v514, 4
      %v1048 = vsel %vm1043, %v1045, %v1047
      %v1049 = vrot.slane %v515, 4
      %v1050 = vrot.slane %v516, 4
      %v1051 = vsel %vm1043, %v1049, %v1050
      %v1052 = vrot.slane %v517, 4
      %v1053 = vsel %vm1043, %v1050, %v1052
      %v1054 = vrot.slane %v518, 4
      %v1055 = vrot.slane %v519, 4
      %v1056 = vsel %vm1043, %v1054, %v1055
      %v1057 = vrot.slane %v520, 4
      %v1058 = vsel %vm1043, %v1055, %v1057
      %v1059 = vrot.slane %v521, 4
      %v1060 = vrot.slane %v522, 4
      %v1061 = vsel %vm1043, %v1059, %v1060
      %v1062 = vrot.slane %v523, 4
      %v1063 = vsel %vm1043, %v1060, %v1062
      %v1064 = vrot.slane %v524, 4
      %v1065 = vrot.slane %v525, 4
      %v1066 = vsel %vm1043, %v1064, %v1065
      %v1067 = vrot.slane %v526, 4
      %v1068 = vsel %vm1043, %v1065, %v1067
      %v1069 = vrot.slane %v527, 4
      %v1070 = vrot.slane %v528, 4
      %v1071 = vsel %vm1043, %v1069, %v1070
      %v1072 = vrot.slane %v529, 4
      %v1073 = vsel %vm1043, %v1070, %v1072
      %v1074 = vrot.slane %v530, 4
      %v1075 = vrot.slane %v531, 4
      %v1076 = vsel %vm1043, %v1074, %v1075
      %v1077 = vrot.slane %v532, 4
      %v1078 = vsel %vm1043, %v1075, %v1077
      %v1079 = vrot.slane %v533, 4
      %v1080 = vrot.slane %v534, 4
      %v1081 = vsel %vm1043, %v1079, %v1080
      %v1082 = vrot.slane %v535, 4
      %v1083 = vsel %vm1043, %v1080, %v1082
      %v1084 = vrot.slane %v536, 4
      %v1085 = vrot.slane %v537, 4
      %v1086 = vsel %vm1043, %v1084, %v1085
      %v1087 = vrot.slane %v538, 4
      %v1088 = vsel %vm1043, %v1085, %v1087
      %v1089 = vrot.slane %v539, 4
      %v1090 = vrot.slane %v540, 4
      %v1091 = vsel %vm1043, %v1089, %v1090
      %v1092 = vrot.slane %v541, 4
      %v1093 = vsel %vm1043, %v1090, %v1092
      %v1094 = vrot.slane %v542, 4
      %v1095 = vrot.slane %v543, 4
      %v1096 = vsel %vm1043, %v1094, %v1095
      %v1097 = vrot.slane %v544, 4
      %v1098 = vsel %vm1043, %v1095, %v1097
      %v1099 = vrot.slane %v545, 4
      %v1100 = vrot.slane %v546, 4
      %v1101 = vsel %vm1043, %v1099, %v1100
      %v1102 = vrot.slane %v547, 4
      %v1103 = vsel %vm1043, %v1100, %v1102
      %v1104 = vrot.slane %v548, 4
      %v1105 = vrot.slane %v549, 4
      %v1106 = vsel %vm1043, %v1104, %v1105
      %v1107 = vrot.slane %v550, 4
      %v1108 = vsel %vm1043, %v1105, %v1107
      %v1109 = vrot.slane %v551, 4
      %v1110 = vrot.slane %v552, 4
      %v1111 = vsel %vm1043, %v1109, %v1110
      %v1112 = vrot.slane %v553, 4
      %v1113 = vsel %vm1043, %v1110, %v1112
      %v1114 = vrot.slane %v554, 4
      %v1115 = vrot.slane %v555, 4
      %v1116 = vsel %vm1043, %v1114, %v1115
      %v1117 = vrot.slane %v556, 4
      %v1118 = vsel %vm1043, %v1115, %v1117
      %v1119 = vrot.slane %v557, 4
      %v1120 = vrot.slane %v558, 4
      %v1121 = vsel %vm1043, %v1119, %v1120
      %v1122 = vrot.slane %v559, 4
      %v1123 = vsel %vm1043, %v1120, %v1122
      %v1156 = vmax.f32 %v1011, %v1046
      %v1157 = vmax.f32 %v1012, %v1048
      %v1158 = vmax.f32 %v1013, %v1051
      %v1159 = vmax.f32 %v1014, %v1053
      %v1160 = vmax.f32 %v1015, %v1056
      %v1161 = vmax.f32 %v1016, %v1058
      %v1162 = vmax.f32 %v1017, %v1061
      %v1163 = vmax.f32 %v1018, %v1063
      %v1164 = vmax.f32 %v1019, %v1066
      %v1165 = vmax.f32 %v1020, %v1068
      %v1166 = vmax.f32 %v1021, %v1071
      %v1167 = vmax.f32 %v1022, %v1073
      %v1168 = vmax.f32 %v1023, %v1076
      %v1169 = vmax.f32 %v1024, %v1078
      %v1170 = vmax.f32 %v1025, %v1081
      %v1171 = vmax.f32 %v1026, %v1083
      %v1172 = vmax.f32 %v1027, %v1086
      %v1173 = vmax.f32 %v1028, %v1088
      %v1174 = vmax.f32 %v1029, %v1091
      %v1175 = vmax.f32 %v1030, %v1093
      %v1176 = vmax.f32 %v1031, %v1096
      %v1177 = vmax.f32 %v1032, %v1098
      %v1178 = vmax.f32 %v1033, %v1101
      %v1179 = vmax.f32 %v1034, %v1103
      %v1180 = vmax.f32 %v1035, %v1106
      %v1181 = vmax.f32 %v1036, %v1108
      %v1182 = vmax.f32 %v1037, %v1111
      %v1183 = vmax.f32 %v1038, %v1113
      %v1184 = vmax.f32 %v1039, %v1116
      %v1185 = vmax.f32 %v1040, %v1118
      %v1186 = vmax.f32 %v1041, %v1121
      %v1187 = vmax.f32 %v1042, %v1123
      %s1188 = scalar_lea.vmem %s147, 512
      %1189 = vst.msk [vmem:[%s1188] sm:$0xff] %vm181, %v1156
      %1190 = vst.msk [vmem:[%s1188 + $0x8] sm:$0xff] %vm181, %v1157
      %1191 = vst.msk [vmem:[%s1188 + $0x10] sm:$0xff] %vm181, %v1158
      %1192 = vst.msk [vmem:[%s1188 + $0x18] sm:$0xff] %vm181, %v1159
      %1193 = vst.msk [vmem:[%s1188 + $0x20] sm:$0xff] %vm181, %v1160
      %1194 = vst.msk [vmem:[%s1188 + $0x28] sm:$0xff] %vm181, %v1161
      %1195 = vst.msk [vmem:[%s1188 + $0x30] sm:$0xff] %vm181, %v1162
      %1196 = vst.msk [vmem:[%s1188 + $0x38] sm:$0xff] %vm181, %v1163
      %1197 = vst.msk [vmem:[%s1188 + $0x40] sm:$0xff] %vm181, %v1164
      %1198 = vst.msk [vmem:[%s1188 + $0x48] sm:$0xff] %vm181, %v1165
      %1199 = vst.msk [vmem:[%s1188 + $0x50] sm:$0xff] %vm181, %v1166
      %1200 = vst.msk [vmem:[%s1188 + $0x58] sm:$0xff] %vm181, %v1167
      %1201 = vst.msk [vmem:[%s1188 + $0x60] sm:$0xff] %vm181, %v1168
      %1202 = vst.msk [vmem:[%s1188 + $0x68] sm:$0xff] %vm181, %v1169
      %1203 = vst.msk [vmem:[%s1188 + $0x70] sm:$0xff] %vm181, %v1170
      %1204 = vst.msk [vmem:[%s1188 + $0x78] sm:$0xff] %vm181, %v1171
      %1205 = vst.msk [vmem:[%s1188 + $0x80] sm:$0xff] %vm181, %v1172
      %1206 = vst.msk [vmem:[%s1188 + $0x88] sm:$0xff] %vm181, %v1173
      %1207 = vst.msk [vmem:[%s1188 + $0x90] sm:$0xff] %vm181, %v1174
      %1208 = vst.msk [vmem:[%s1188 + $0x98] sm:$0xff] %vm181, %v1175
      %1209 = vst.msk [vmem:[%s1188 + $0xa0] sm:$0xff] %vm181, %v1176
      %1210 = vst.msk [vmem:[%s1188 + $0xa8] sm:$0xff] %vm181, %v1177
      %1211 = vst.msk [vmem:[%s1188 + $0xb0] sm:$0xff] %vm181, %v1178
      %1212 = vst.msk [vmem:[%s1188 + $0xb8] sm:$0xff] %vm181, %v1179
      %1213 = vst.msk [vmem:[%s1188 + $0xc0] sm:$0xff] %vm181, %v1180
      %1214 = vst.msk [vmem:[%s1188 + $0xc8] sm:$0xff] %vm181, %v1181
      %1215 = vst.msk [vmem:[%s1188 + $0xd0] sm:$0xff] %vm181, %v1182
      %1216 = vst.msk [vmem:[%s1188 + $0xd8] sm:$0xff] %vm181, %v1183
      %1217 = vst.msk [vmem:[%s1188 + $0xe0] sm:$0xff] %vm181, %v1184
      %1218 = vst.msk [vmem:[%s1188 + $0xe8] sm:$0xff] %vm181, %v1185
      %1219 = vst.msk [vmem:[%s1188 + $0xf0] sm:$0xff] %vm181, %v1186
      %1220 = vst.msk [vmem:[%s1188 + $0xf8] sm:$0xff] %vm181, %v1187
      %1221 = vst.msk [vmem:[%s275 + $0x2] sm:$0xff] %vm181, %v1156
      %1222 = vst.msk [vmem:[%s275 + $0xa] sm:$0xff] %vm181, %v1157
      %1223 = vst.msk [vmem:[%s275 + $0x1a] sm:$0xff] %vm181, %v1158
      %1224 = vst.msk [vmem:[%s275 + $0x22] sm:$0xff] %vm181, %v1159
      %1225 = vst.msk [vmem:[%s275 + $0x32] sm:$0xff] %vm181, %v1160
      %1226 = vst.msk [vmem:[%s275 + $0x3a] sm:$0xff] %vm181, %v1161
      %1227 = vst.msk [vmem:[%s275 + $0x4a] sm:$0xff] %vm181, %v1162
      %1228 = vst.msk [vmem:[%s275 + $0x52] sm:$0xff] %vm181, %v1163
      %1229 = vst.msk [vmem:[%s275 + $0x62] sm:$0xff] %vm181, %v1164
      %1230 = vst.msk [vmem:[%s275 + $0x6a] sm:$0xff] %vm181, %v1165
      %1231 = vst.msk [vmem:[%s275 + $0x7a] sm:$0xff] %vm181, %v1166
      %1232 = vst.msk [vmem:[%s275 + $0x82] sm:$0xff] %vm181, %v1167
      %1233 = vst.msk [vmem:[%s275 + $0x92] sm:$0xff] %vm181, %v1168
      %1234 = vst.msk [vmem:[%s275 + $0x9a] sm:$0xff] %vm181, %v1169
      %1235 = vst.msk [vmem:[%s275 + $0xaa] sm:$0xff] %vm181, %v1170
      %1236 = vst.msk [vmem:[%s275 + $0xb2] sm:$0xff] %vm181, %v1171
      %1237 = vst.msk [vmem:[%s275 + $0xc2] sm:$0xff] %vm181, %v1172
      %1238 = vst.msk [vmem:[%s275 + $0xca] sm:$0xff] %vm181, %v1173
      %1239 = vst.msk [vmem:[%s275 + $0xda] sm:$0xff] %vm181, %v1174
      %1240 = vst.msk [vmem:[%s275 + $0xe2] sm:$0xff] %vm181, %v1175
      %1241 = vst.msk [vmem:[%s275 + $0xf2] sm:$0xff] %vm181, %v1176
      %1242 = vst.msk [vmem:[%s275 + $0xfa] sm:$0xff] %vm181, %v1177
      %1243 = vst.msk [vmem:[%s275 + $0x10a] sm:$0xff] %vm181, %v1178
      %1244 = vst.msk [vmem:[%s275 + $0x112] sm:$0xff] %vm181, %v1179
      %1245 = vst.msk [vmem:[%s275 + $0x122] sm:$0xff] %vm181, %v1180
      %1246 = vst.msk [vmem:[%s275 + $0x12a] sm:$0xff] %vm181, %v1181
      %1247 = vst.msk [vmem:[%s275 + $0x13a] sm:$0xff] %vm181, %v1182
      %1248 = vst.msk [vmem:[%s275 + $0x142] sm:$0xff] %vm181, %v1183
      %1249 = vst.msk [vmem:[%s275 + $0x152] sm:$0xff] %vm181, %v1184
      %1250 = vst.msk [vmem:[%s275 + $0x15a] sm:$0xff] %vm181, %v1185
      %1251 = vst.msk [vmem:[%s275 + $0x16a] sm:$0xff] %vm181, %v1186
      %1252 = vst.msk [vmem:[%s275 + $0x172] sm:$0xff] %vm181, %v1187
      %v1253 = vld [vmem:[#allocation2] sm:$0xff]
      %v1254 = vld [vmem:[#allocation2 + $0x8] sm:$0xff]
      %v1255 = vld [vmem:[#allocation2 + $0x10] sm:$0xf]
      %v1256 = vld [vmem:[#allocation2 + $0x18] sm:$0xff]
      %v1257 = vld [vmem:[#allocation2 + $0x20] sm:$0xff]
      %v1258 = vld [vmem:[#allocation2 + $0x28] sm:$0xf]
      %v1259 = vld [vmem:[#allocation2 + $0x30] sm:$0xff]
      %v1260 = vld [vmem:[#allocation2 + $0x38] sm:$0xff]
      %v1261 = vld [vmem:[#allocation2 + $0x40] sm:$0xf]
      %v1262 = vld [vmem:[#allocation2 + $0x48] sm:$0xff]
      %v1263 = vld [vmem:[#allocation2 + $0x50] sm:$0xff]
      %v1264 = vld [vmem:[#allocation2 + $0x58] sm:$0xf]
      %v1265 = vld [vmem:[#allocation2 + $0x60] sm:$0xff]
      %v1266 = vld [vmem:[#allocation2 + $0x68] sm:$0xff]
      %v1267 = vld [vmem:[#allocation2 + $0x70] sm:$0xf]
      %v1268 = vld [vmem:[#allocation2 + $0x78] sm:$0xff]
      %v1269 = vld [vmem:[#allocation2 + $0x80] sm:$0xff]
      %v1270 = vld [vmem:[#allocation2 + $0x88] sm:$0xf]
      %v1271 = vld [vmem:[#allocation2 + $0x90] sm:$0xff]
      %v1272 = vld [vmem:[#allocation2 + $0x98] sm:$0xff]
      %v1273 = vld [vmem:[#allocation2 + $0xa0] sm:$0xf]
      %v1274 = vld [vmem:[#allocation2 + $0xa8] sm:$0xff]
      %v1275 = vld [vmem:[#allocation2 + $0xb0] sm:$0xff]
      %v1276 = vld [vmem:[#allocation2 + $0xb8] sm:$0xf]
      %v1277 = vld [vmem:[#allocation2 + $0xc0] sm:$0xff]
      %v1278 = vld [vmem:[#allocation2 + $0xc8] sm:$0xff]
      %v1279 = vld [vmem:[#allocation2 + $0xd0] sm:$0xf]
      %v1280 = vld [vmem:[#allocation2 + $0xd8] sm:$0xff]
      %v1281 = vld [vmem:[#allocation2 + $0xe0] sm:$0xff]
      %v1282 = vld [vmem:[#allocation2 + $0xe8] sm:$0xf]
      %v1283 = vld [vmem:[#allocation2 + $0xf0] sm:$0xff]
      %v1284 = vld [vmem:[#allocation2 + $0xf8] sm:$0xff]
      %v1285 = vld [vmem:[#allocation2 + $0x100] sm:$0xf]
      %v1286 = vld [vmem:[#allocation2 + $0x108] sm:$0xff]
      %v1287 = vld [vmem:[#allocation2 + $0x110] sm:$0xff]
      %v1288 = vld [vmem:[#allocation2 + $0x118] sm:$0xf]
      %v1289 = vld [vmem:[#allocation2 + $0x120] sm:$0xff]
      %v1290 = vld [vmem:[#allocation2 + $0x128] sm:$0xff]
      %v1291 = vld [vmem:[#allocation2 + $0x130] sm:$0xf]
      %v1292 = vld [vmem:[#allocation2 + $0x138] sm:$0xff]
      %v1293 = vld [vmem:[#allocation2 + $0x140] sm:$0xff]
      %v1294 = vld [vmem:[#allocation2 + $0x148] sm:$0xf]
      %v1295 = vld [vmem:[#allocation2 + $0x150] sm:$0xff]
      %v1296 = vld [vmem:[#allocation2 + $0x158] sm:$0xff]
      %v1297 = vld [vmem:[#allocation2 + $0x160] sm:$0xf]
      %v1298 = vld [vmem:[#allocation2 + $0x168] sm:$0xff]
      %v1299 = vld [vmem:[#allocation2 + $0x170] sm:$0xff]
      %v1300 = vld [vmem:[#allocation2 + $0x178] sm:$0xf]
      %v1301 = vld [vmem:[#allocation2 + $0x180] sm:$0xff]
      %v1302 = vld [vmem:[#allocation2 + $0x188] sm:$0xff]
      %v1303 = vld [vmem:[#allocation2 + $0x190] sm:$0xf]
      %v1304 = vld [vmem:[#allocation2 + $0x198] sm:$0xff]
      %v1305 = vld [vmem:[#allocation2 + $0x1a0] sm:$0xff]
      %v1306 = vld [vmem:[#allocation2 + $0x1a8] sm:$0xf]
      %v1307 = vld [vmem:[#allocation2 + $0x1b0] sm:$0xff]
      %v1308 = vld [vmem:[#allocation2 + $0x1b8] sm:$0xff]
      %v1309 = vld [vmem:[#allocation2 + $0x1c0] sm:$0xf]
      %v1310 = vld [vmem:[#allocation2 + $0x1c8] sm:$0xff]
      %v1311 = vld [vmem:[#allocation2 + $0x1d0] sm:$0xff]
      %v1312 = vld [vmem:[#allocation2 + $0x1d8] sm:$0xf]
      %v1313 = vmax.f32 %v1253, %v1256
      %v1314 = vmax.f32 %v1254, %v1257
      %v1315 = vmax.f32 %v1255, %v1258
      %v1316 = vmax.f32 %v1256, %v1259
      %v1317 = vmax.f32 %v1257, %v1260
      %v1318 = vmax.f32 %v1258, %v1261
      %v1319 = vmax.f32 %v1259, %v1262
      %v1320 = vmax.f32 %v1260, %v1263
      %v1321 = vmax.f32 %v1261, %v1264
      %v1322 = vmax.f32 %v1262, %v1265
      %v1323 = vmax.f32 %v1263, %v1266
      %v1324 = vmax.f32 %v1264, %v1267
      %v1325 = vmax.f32 %v1265, %v1268
      %v1326 = vmax.f32 %v1266, %v1269
      %v1327 = vmax.f32 %v1267, %v1270
      %v1328 = vmax.f32 %v1268, %v1271
      %v1329 = vmax.f32 %v1269, %v1272
      %v1330 = vmax.f32 %v1270, %v1273
      %v1331 = vmax.f32 %v1271, %v1274
      %v1332 = vmax.f32 %v1272, %v1275
      %v1333 = vmax.f32 %v1273, %v1276
      %v1334 = vmax.f32 %v1274, %v1277
      %v1335 = vmax.f32 %v1275, %v1278
      %v1336 = vmax.f32 %v1276, %v1279
      %v1337 = vmax.f32 %v1277, %v1280
      %v1338 = vmax.f32 %v1278, %v1281
      %v1339 = vmax.f32 %v1279, %v1282
      %v1340 = vmax.f32 %v1280, %v1283
      %v1341 = vmax.f32 %v1281, %v1284
      %v1342 = vmax.f32 %v1282, %v1285
      %v1343 = vmax.f32 %v1283, %v1286
      %v1344 = vmax.f32 %v1284, %v1287
      %v1345 = vmax.f32 %v1285, %v1288
      %v1346 = vmax.f32 %v1286, %v1289
      %v1347 = vmax.f32 %v1287, %v1290
      %v1348 = vmax.f32 %v1288, %v1291
      %v1349 = vmax.f32 %v1289, %v1292
      %v1350 = vmax.f32 %v1290, %v1293
      %v1351 = vmax.f32 %v1291, %v1294
      %v1352 = vmax.f32 %v1292, %v1295
      %v1353 = vmax.f32 %v1293, %v1296
      %v1354 = vmax.f32 %v1294, %v1297
      %v1355 = vmax.f32 %v1295, %v1298
      %v1356 = vmax.f32 %v1296, %v1299
      %v1357 = vmax.f32 %v1297, %v1300
      %v1358 = vmax.f32 %v1298, %v1301
      %v1359 = vmax.f32 %v1299, %v1302
      %v1360 = vmax.f32 %v1300, %v1303
      %v1361 = vmax.f32 %v1313, %v1259
      %v1362 = vmax.f32 %v1314, %v1260
      %v1363 = vmax.f32 %v1315, %v1261
      %v1364 = vmax.f32 %v1316, %v1262
      %v1365 = vmax.f32 %v1317, %v1263
      %v1366 = vmax.f32 %v1318, %v1264
      %v1367 = vmax.f32 %v1319, %v1265
      %v1368 = vmax.f32 %v1320, %v1266
      %v1369 = vmax.f32 %v1321, %v1267
      %v1370 = vmax.f32 %v1322, %v1268
      %v1371 = vmax.f32 %v1323, %v1269
      %v1372 = vmax.f32 %v1324, %v1270
      %v1373 = vmax.f32 %v1325, %v1271
      %v1374 = vmax.f32 %v1326, %v1272
      %v1375 = vmax.f32 %v1327, %v1273
      %v1376 = vmax.f32 %v1328, %v1274
      %v1377 = vmax.f32 %v1329, %v1275
      %v1378 = vmax.f32 %v1330, %v1276
      %v1379 = vmax.f32 %v1331, %v1277
      %v1380 = vmax.f32 %v1332, %v1278
      %v1381 = vmax.f32 %v1333, %v1279
      %v1382 = vmax.f32 %v1334, %v1280
      %v1383 = vmax.f32 %v1335, %v1281
      %v1384 = vmax.f32 %v1336, %v1282
      %v1385 = vmax.f32 %v1337, %v1283
      %v1386 = vmax.f32 %v1338, %v1284
      %v1387 = vmax.f32 %v1339, %v1285
      %v1388 = vmax.f32 %v1340, %v1286
      %v1389 = vmax.f32 %v1341, %v1287
      %v1390 = vmax.f32 %v1342, %v1288
      %v1391 = vmax.f32 %v1343, %v1289
      %v1392 = vmax.f32 %v1344, %v1290
      %v1393 = vmax.f32 %v1345, %v1291
      %v1394 = vmax.f32 %v1346, %v1292
      %v1395 = vmax.f32 %v1347, %v1293
      %v1396 = vmax.f32 %v1348, %v1294
      %v1397 = vmax.f32 %v1349, %v1295
      %v1398 = vmax.f32 %v1350, %v1296
      %v1399 = vmax.f32 %v1351, %v1297
      %v1400 = vmax.f32 %v1352, %v1298
      %v1401 = vmax.f32 %v1353, %v1299
      %v1402 = vmax.f32 %v1354, %v1300
      %v1403 = vmax.f32 %v1355, %v1301
      %v1404 = vmax.f32 %v1356, %v1302
      %v1405 = vmax.f32 %v1357, %v1303
      %v1406 = vmax.f32 %v1358, %v1304
      %v1407 = vmax.f32 %v1359, %v1305
      %v1408 = vmax.f32 %v1360, %v1306
      %v1409 = vmax.f32 %v1361, %v1262
      %v1410 = vmax.f32 %v1362, %v1263
      %v1411 = vmax.f32 %v1363, %v1264
      %v1412 = vmax.f32 %v1364, %v1265
      %v1413 = vmax.f32 %v1365, %v1266
      %v1414 = vmax.f32 %v1366, %v1267
      %v1415 = vmax.f32 %v1367, %v1268
      %v1416 = vmax.f32 %v1368, %v1269
      %v1417 = vmax.f32 %v1369, %v1270
      %v1418 = vmax.f32 %v1370, %v1271
      %v1419 = vmax.f32 %v1371, %v1272
      %v1420 = vmax.f32 %v1372, %v1273
      %v1421 = vmax.f32 %v1373, %v1274
      %v1422 = vmax.f32 %v1374, %v1275
      %v1423 = vmax.f32 %v1375, %v1276
      %v1424 = vmax.f32 %v1376, %v1277
      %v1425 = vmax.f32 %v1377, %v1278
      %v1426 = vmax.f32 %v1378, %v1279
      %v1427 = vmax.f32 %v1379, %v1280
      %v1428 = vmax.f32 %v1380, %v1281
      %v1429 = vmax.f32 %v1381, %v1282
      %v1430 = vmax.f32 %v1382, %v1283
      %v1431 = vmax.f32 %v1383, %v1284
      %v1432 = vmax.f32 %v1384, %v1285
      %v1433 = vmax.f32 %v1385, %v1286
      %v1434 = vmax.f32 %v1386, %v1287
      %v1435 = vmax.f32 %v1387, %v1288
      %v1436 = vmax.f32 %v1388, %v1289
      %v1437 = vmax.f32 %v1389, %v1290
      %v1438 = vmax.f32 %v1390, %v1291
      %v1439 = vmax.f32 %v1391, %v1292
      %v1440 = vmax.f32 %v1392, %v1293
      %v1441 = vmax.f32 %v1393, %v1294
      %v1442 = vmax.f32 %v1394, %v1295
      %v1443 = vmax.f32 %v1395, %v1296
      %v1444 = vmax.f32 %v1396, %v1297
      %v1445 = vmax.f32 %v1397, %v1298
      %v1446 = vmax.f32 %v1398, %v1299
      %v1447 = vmax.f32 %v1399, %v1300
      %v1448 = vmax.f32 %v1400, %v1301
      %v1449 = vmax.f32 %v1401, %v1302
      %v1450 = vmax.f32 %v1402, %v1303
      %v1451 = vmax.f32 %v1403, %v1304
      %v1452 = vmax.f32 %v1404, %v1305
      %v1453 = vmax.f32 %v1405, %v1306
      %v1454 = vmax.f32 %v1406, %v1307
      %v1455 = vmax.f32 %v1407, %v1308
      %v1456 = vmax.f32 %v1408, %v1309
      %v1457 = vmax.f32 %v1409, %v1265
      %v1458 = vmax.f32 %v1410, %v1266
      %v1459 = vmax.f32 %v1411, %v1267
      %v1460 = vmax.f32 %v1412, %v1268
      %v1461 = vmax.f32 %v1413, %v1269
      %v1462 = vmax.f32 %v1414, %v1270
      %v1463 = vmax.f32 %v1415, %v1271
      %v1464 = vmax.f32 %v1416, %v1272
      %v1465 = vmax.f32 %v1417, %v1273
      %v1466 = vmax.f32 %v1418, %v1274
      %v1467 = vmax.f32 %v1419, %v1275
      %v1468 = vmax.f32 %v1420, %v1276
      %v1469 = vmax.f32 %v1421, %v1277
      %v1470 = vmax.f32 %v1422, %v1278
      %v1471 = vmax.f32 %v1423, %v1279
      %v1472 = vmax.f32 %v1424, %v1280
      %v1473 = vmax.f32 %v1425, %v1281
      %v1474 = vmax.f32 %v1426, %v1282
      %v1475 = vmax.f32 %v1427, %v1283
      %v1476 = vmax.f32 %v1428, %v1284
      %v1477 = vmax.f32 %v1429, %v1285
      %v1478 = vmax.f32 %v1430, %v1286
      %v1479 = vmax.f32 %v1431, %v1287
      %v1480 = vmax.f32 %v1432, %v1288
      %v1481 = vmax.f32 %v1433, %v1289
      %v1482 = vmax.f32 %v1434, %v1290
      %v1483 = vmax.f32 %v1435, %v1291
      %v1484 = vmax.f32 %v1436, %v1292
      %v1485 = vmax.f32 %v1437, %v1293
      %v1486 = vmax.f32 %v1438, %v1294
      %v1487 = vmax.f32 %v1439, %v1295
      %v1488 = vmax.f32 %v1440, %v1296
      %v1489 = vmax.f32 %v1441, %v1297
      %v1490 = vmax.f32 %v1442, %v1298
      %v1491 = vmax.f32 %v1443, %v1299
      %v1492 = vmax.f32 %v1444, %v1300
      %v1493 = vmax.f32 %v1445, %v1301
      %v1494 = vmax.f32 %v1446, %v1302
      %v1495 = vmax.f32 %v1447, %v1303
      %v1496 = vmax.f32 %v1448, %v1304
      %v1497 = vmax.f32 %v1449, %v1305
      %v1498 = vmax.f32 %v1450, %v1306
      %v1499 = vmax.f32 %v1451, %v1307
      %v1500 = vmax.f32 %v1452, %v1308
      %v1501 = vmax.f32 %v1453, %v1309
      %v1502 = vmax.f32 %v1454, %v1310
      %v1503 = vmax.f32 %v1455, %v1311
      %v1504 = vmax.f32 %v1456, %v1312
      %v1553 = vrot.slane %v1457, 1
      %v1554 = vrot.slane %v1458, 1
      %v1555 = vsel %vm608, %v1553, %v1554
      %v1556 = vrot.slane %v1459, 1
      %v1557 = vsel %vm608, %v1554, %v1556
      %v1558 = vrot.slane %v1460, 1
      %v1559 = vrot.slane %v1461, 1
      %v1560 = vsel %vm608, %v1558, %v1559
      %v1561 = vrot.slane %v1462, 1
      %v1562 = vsel %vm608, %v1559, %v1561
      %v1563 = vrot.slane %v1463, 1
      %v1564 = vrot.slane %v1464, 1
      %v1565 = vsel %vm608, %v1563, %v1564
      %v1566 = vrot.slane %v1465, 1
      %v1567 = vsel %vm608, %v1564, %v1566
      %v1568 = vrot.slane %v1466, 1
      %v1569 = vrot.slane %v1467, 1
      %v1570 = vsel %vm608, %v1568, %v1569
      %v1571 = vrot.slane %v1468, 1
      %v1572 = vsel %vm608, %v1569, %v1571
      %v1573 = vrot.slane %v1469, 1
      %v1574 = vrot.slane %v1470, 1
      %v1575 = vsel %vm608, %v1573, %v1574
      %v1576 = vrot.slane %v1471, 1
      %v1577 = vsel %vm608, %v1574, %v1576
      %v1578 = vrot.slane %v1472, 1
      %v1579 = vrot.slane %v1473, 1
      %v1580 = vsel %vm608, %v1578, %v1579
      %v1581 = vrot.slane %v1474, 1
      %v1582 = vsel %vm608, %v1579, %v1581
      %v1583 = vrot.slane %v1475, 1
      %v1584 = vrot.slane %v1476, 1
      %v1585 = vsel %vm608, %v1583, %v1584
      %v1586 = vrot.slane %v1477, 1
      %v1587 = vsel %vm608, %v1584, %v1586
      %v1588 = vrot.slane %v1478, 1
      %v1589 = vrot.slane %v1479, 1
      %v1590 = vsel %vm608, %v1588, %v1589
      %v1591 = vrot.slane %v1480, 1
      %v1592 = vsel %vm608, %v1589, %v1591
      %v1593 = vrot.slane %v1481, 1
      %v1594 = vrot.slane %v1482, 1
      %v1595 = vsel %vm608, %v1593, %v1594
      %v1596 = vrot.slane %v1483, 1
      %v1597 = vsel %vm608, %v1594, %v1596
      %v1598 = vrot.slane %v1484, 1
      %v1599 = vrot.slane %v1485, 1
      %v1600 = vsel %vm608, %v1598, %v1599
      %v1601 = vrot.slane %v1486, 1
      %v1602 = vsel %vm608, %v1599, %v1601
      %v1603 = vrot.slane %v1487, 1
      %v1604 = vrot.slane %v1488, 1
      %v1605 = vsel %vm608, %v1603, %v1604
      %v1606 = vrot.slane %v1489, 1
      %v1607 = vsel %vm608, %v1604, %v1606
      %v1608 = vrot.slane %v1490, 1
      %v1609 = vrot.slane %v1491, 1
      %v1610 = vsel %vm608, %v1608, %v1609
      %v1611 = vrot.slane %v1492, 1
      %v1612 = vsel %vm608, %v1609, %v1611
      %v1613 = vrot.slane %v1493, 1
      %v1614 = vrot.slane %v1494, 1
      %v1615 = vsel %vm608, %v1613, %v1614
      %v1616 = vrot.slane %v1495, 1
      %v1617 = vsel %vm608, %v1614, %v1616
      %v1618 = vrot.slane %v1496, 1
      %v1619 = vrot.slane %v1497, 1
      %v1620 = vsel %vm608, %v1618, %v1619
      %v1621 = vrot.slane %v1498, 1
      %v1622 = vsel %vm608, %v1619, %v1621
      %v1623 = vrot.slane %v1499, 1
      %v1624 = vrot.slane %v1500, 1
      %v1625 = vsel %vm608, %v1623, %v1624
      %v1626 = vrot.slane %v1501, 1
      %v1627 = vsel %vm608, %v1624, %v1626
      %v1628 = vrot.slane %v1502, 1
      %v1629 = vrot.slane %v1503, 1
      %v1630 = vsel %vm608, %v1628, %v1629
      %v1631 = vrot.slane %v1504, 1
      %v1632 = vsel %vm608, %v1629, %v1631
      %v1665 = vmax.f32 %v1457, %v1555
      %v1666 = vmax.f32 %v1458, %v1557
      %v1667 = vmax.f32 %v1460, %v1560
      %v1668 = vmax.f32 %v1461, %v1562
      %v1669 = vmax.f32 %v1463, %v1565
      %v1670 = vmax.f32 %v1464, %v1567
      %v1671 = vmax.f32 %v1466, %v1570
      %v1672 = vmax.f32 %v1467, %v1572
      %v1673 = vmax.f32 %v1469, %v1575
      %v1674 = vmax.f32 %v1470, %v1577
      %v1675 = vmax.f32 %v1472, %v1580
      %v1676 = vmax.f32 %v1473, %v1582
      %v1677 = vmax.f32 %v1475, %v1585
      %v1678 = vmax.f32 %v1476, %v1587
      %v1679 = vmax.f32 %v1478, %v1590
      %v1680 = vmax.f32 %v1479, %v1592
      %v1681 = vmax.f32 %v1481, %v1595
      %v1682 = vmax.f32 %v1482, %v1597
      %v1683 = vmax.f32 %v1484, %v1600
      %v1684 = vmax.f32 %v1485, %v1602
      %v1685 = vmax.f32 %v1487, %v1605
      %v1686 = vmax.f32 %v1488, %v1607
      %v1687 = vmax.f32 %v1490, %v1610
      %v1688 = vmax.f32 %v1491, %v1612
      %v1689 = vmax.f32 %v1493, %v1615
      %v1690 = vmax.f32 %v1494, %v1617
      %v1691 = vmax.f32 %v1496, %v1620
      %v1692 = vmax.f32 %v1497, %v1622
      %v1693 = vmax.f32 %v1499, %v1625
      %v1694 = vmax.f32 %v1500, %v1627
      %v1695 = vmax.f32 %v1502, %v1630
      %v1696 = vmax.f32 %v1503, %v1632
      %v1697 = vrot.slane %v1457, 2
      %v1698 = vrot.slane %v1458, 2
      %v1699 = vsel %vm753, %v1697, %v1698
      %v1700 = vrot.slane %v1459, 2
      %v1701 = vsel %vm753, %v1698, %v1700
      %v1702 = vrot.slane %v1460, 2
      %v1703 = vrot.slane %v1461, 2
      %v1704 = vsel %vm753, %v1702, %v1703
      %v1705 = vrot.slane %v1462, 2
      %v1706 = vsel %vm753, %v1703, %v1705
      %v1707 = vrot.slane %v1463, 2
      %v1708 = vrot.slane %v1464, 2
      %v1709 = vsel %vm753, %v1707, %v1708
      %v1710 = vrot.slane %v1465, 2
      %v1711 = vsel %vm753, %v1708, %v1710
      %v1712 = vrot.slane %v1466, 2
      %v1713 = vrot.slane %v1467, 2
      %v1714 = vsel %vm753, %v1712, %v1713
      %v1715 = vrot.slane %v1468, 2
      %v1716 = vsel %vm753, %v1713, %v1715
      %v1717 = vrot.slane %v1469, 2
      %v1718 = vrot.slane %v1470, 2
      %v1719 = vsel %vm753, %v1717, %v1718
      %v1720 = vrot.slane %v1471, 2
      %v1721 = vsel %vm753, %v1718, %v1720
      %v1722 = vrot.slane %v1472, 2
      %v1723 = vrot.slane %v1473, 2
      %v1724 = vsel %vm753, %v1722, %v1723
      %v1725 = vrot.slane %v1474, 2
      %v1726 = vsel %vm753, %v1723, %v1725
      %v1727 = vrot.slane %v1475, 2
      %v1728 = vrot.slane %v1476, 2
      %v1729 = vsel %vm753, %v1727, %v1728
      %v1730 = vrot.slane %v1477, 2
      %v1731 = vsel %vm753, %v1728, %v1730
      %v1732 = vrot.slane %v1478, 2
      %v1733 = vrot.slane %v1479, 2
      %v1734 = vsel %vm753, %v1732, %v1733
      %v1735 = vrot.slane %v1480, 2
      %v1736 = vsel %vm753, %v1733, %v1735
      %v1737 = vrot.slane %v1481, 2
      %v1738 = vrot.slane %v1482, 2
      %v1739 = vsel %vm753, %v1737, %v1738
      %v1740 = vrot.slane %v1483, 2
      %v1741 = vsel %vm753, %v1738, %v1740
      %v1742 = vrot.slane %v1484, 2
      %v1743 = vrot.slane %v1485, 2
      %v1744 = vsel %vm753, %v1742, %v1743
      %v1745 = vrot.slane %v1486, 2
      %v1746 = vsel %vm753, %v1743, %v1745
      %v1747 = vrot.slane %v1487, 2
      %v1748 = vrot.slane %v1488, 2
      %v1749 = vsel %vm753, %v1747, %v1748
      %v1750 = vrot.slane %v1489, 2
      %v1751 = vsel %vm753, %v1748, %v1750
      %v1752 = vrot.slane %v1490, 2
      %v1753 = vrot.slane %v1491, 2
      %v1754 = vsel %vm753, %v1752, %v1753
      %v1755 = vrot.slane %v1492, 2
      %v1756 = vsel %vm753, %v1753, %v1755
      %v1757 = vrot.slane %v1493, 2
      %v1758 = vrot.slane %v1494, 2
      %v1759 = vsel %vm753, %v1757, %v1758
      %v1760 = vrot.slane %v1495, 2
      %v1761 = vsel %vm753, %v1758, %v1760
      %v1762 = vrot.slane %v1496, 2
      %v1763 = vrot.slane %v1497, 2
      %v1764 = vsel %vm753, %v1762, %v1763
      %v1765 = vrot.slane %v1498, 2
      %v1766 = vsel %vm753, %v1763, %v1765
      %v1767 = vrot.slane %v1499, 2
      %v1768 = vrot.slane %v1500, 2
      %v1769 = vsel %vm753, %v1767, %v1768
      %v1770 = vrot.slane %v1501, 2
      %v1771 = vsel %vm753, %v1768, %v1770
      %v1772 = vrot.slane %v1502, 2
      %v1773 = vrot.slane %v1503, 2
      %v1774 = vsel %vm753, %v1772, %v1773
      %v1775 = vrot.slane %v1504, 2
      %v1776 = vsel %vm753, %v1773, %v1775
      %v1809 = vmax.f32 %v1665, %v1699
      %v1810 = vmax.f32 %v1666, %v1701
      %v1811 = vmax.f32 %v1667, %v1704
      %v1812 = vmax.f32 %v1668, %v1706
      %v1813 = vmax.f32 %v1669, %v1709
      %v1814 = vmax.f32 %v1670, %v1711
      %v1815 = vmax.f32 %v1671, %v1714
      %v1816 = vmax.f32 %v1672, %v1716
      %v1817 = vmax.f32 %v1673, %v1719
      %v1818 = vmax.f32 %v1674, %v1721
      %v1819 = vmax.f32 %v1675, %v1724
      %v1820 = vmax.f32 %v1676, %v1726
      %v1821 = vmax.f32 %v1677, %v1729
      %v1822 = vmax.f32 %v1678, %v1731
      %v1823 = vmax.f32 %v1679, %v1734
      %v1824 = vmax.f32 %v1680, %v1736
      %v1825 = vmax.f32 %v1681, %v1739
      %v1826 = vmax.f32 %v1682, %v1741
      %v1827 = vmax.f32 %v1683, %v1744
      %v1828 = vmax.f32 %v1684, %v1746
      %v1829 = vmax.f32 %v1685, %v1749
      %v1830 = vmax.f32 %v1686, %v1751
      %v1831 = vmax.f32 %v1687, %v1754
      %v1832 = vmax.f32 %v1688, %v1756
      %v1833 = vmax.f32 %v1689, %v1759
      %v1834 = vmax.f32 %v1690, %v1761
      %v1835 = vmax.f32 %v1691, %v1764
      %v1836 = vmax.f32 %v1692, %v1766
      %v1837 = vmax.f32 %v1693, %v1769
      %v1838 = vmax.f32 %v1694, %v1771
      %v1839 = vmax.f32 %v1695, %v1774
      %v1840 = vmax.f32 %v1696, %v1776
      %v1841 = vrot.slane %v1457, 3
      %v1842 = vrot.slane %v1458, 3
      %v1843 = vsel %vm898, %v1841, %v1842
      %v1844 = vrot.slane %v1459, 3
      %v1845 = vsel %vm898, %v1842, %v1844
      %v1846 = vrot.slane %v1460, 3
      %v1847 = vrot.slane %v1461, 3
      %v1848 = vsel %vm898, %v1846, %v1847
      %v1849 = vrot.slane %v1462, 3
      %v1850 = vsel %vm898, %v1847, %v1849
      %v1851 = vrot.slane %v1463, 3
      %v1852 = vrot.slane %v1464, 3
      %v1853 = vsel %vm898, %v1851, %v1852
      %v1854 = vrot.slane %v1465, 3
      %v1855 = vsel %vm898, %v1852, %v1854
      %v1856 = vrot.slane %v1466, 3
      %v1857 = vrot.slane %v1467, 3
      %v1858 = vsel %vm898, %v1856, %v1857
      %v1859 = vrot.slane %v1468, 3
      %v1860 = vsel %vm898, %v1857, %v1859
      %v1861 = vrot.slane %v1469, 3
      %v1862 = vrot.slane %v1470, 3
      %v1863 = vsel %vm898, %v1861, %v1862
      %v1864 = vrot.slane %v1471, 3
      %v1865 = vsel %vm898, %v1862, %v1864
      %v1866 = vrot.slane %v1472, 3
      %v1867 = vrot.slane %v1473, 3
      %v1868 = vsel %vm898, %v1866, %v1867
      %v1869 = vrot.slane %v1474, 3
      %v1870 = vsel %vm898, %v1867, %v1869
      %v1871 = vrot.slane %v1475, 3
      %v1872 = vrot.slane %v1476, 3
      %v1873 = vsel %vm898, %v1871, %v1872
      %v1874 = vrot.slane %v1477, 3
      %v1875 = vsel %vm898, %v1872, %v1874
      %v1876 = vrot.slane %v1478, 3
      %v1877 = vrot.slane %v1479, 3
      %v1878 = vsel %vm898, %v1876, %v1877
      %v1879 = vrot.slane %v1480, 3
      %v1880 = vsel %vm898, %v1877, %v1879
      %v1881 = vrot.slane %v1481, 3
      %v1882 = vrot.slane %v1482, 3
      %v1883 = vsel %vm898, %v1881, %v1882
      %v1884 = vrot.slane %v1483, 3
      %v1885 = vsel %vm898, %v1882, %v1884
      %v1886 = vrot.slane %v1484, 3
      %v1887 = vrot.slane %v1485, 3
      %v1888 = vsel %vm898, %v1886, %v1887
      %v1889 = vrot.slane %v1486, 3
      %v1890 = vsel %vm898, %v1887, %v1889
      %v1891 = vrot.slane %v1487, 3
      %v1892 = vrot.slane %v1488, 3
      %v1893 = vsel %vm898, %v1891, %v1892
      %v1894 = vrot.slane %v1489, 3
      %v1895 = vsel %vm898, %v1892, %v1894
      %v1896 = vrot.slane %v1490, 3
      %v1897 = vrot.slane %v1491, 3
      %v1898 = vsel %vm898, %v1896, %v1897
      %v1899 = vrot.slane %v1492, 3
      %v1900 = vsel %vm898, %v1897, %v1899
      %v1901 = vrot.slane %v1493, 3
      %v1902 = vrot.slane %v1494, 3
      %v1903 = vsel %vm898, %v1901, %v1902
      %v1904 = vrot.slane %v1495, 3
      %v1905 = vsel %vm898, %v1902, %v1904
      %v1906 = vrot.slane %v1496, 3
      %v1907 = vrot.slane %v1497, 3
      %v1908 = vsel %vm898, %v1906, %v1907
      %v1909 = vrot.slane %v1498, 3
      %v1910 = vsel %vm898, %v1907, %v1909
      %v1911 = vrot.slane %v1499, 3
      %v1912 = vrot.slane %v1500, 3
      %v1913 = vsel %vm898, %v1911, %v1912
      %v1914 = vrot.slane %v1501, 3
      %v1915 = vsel %vm898, %v1912, %v1914
      %v1916 = vrot.slane %v1502, 3
      %v1917 = vrot.slane %v1503, 3
      %v1918 = vsel %vm898, %v1916, %v1917
      %v1919 = vrot.slane %v1504, 3
      %v1920 = vsel %vm898, %v1917, %v1919
      %v1953 = vmax.f32 %v1809, %v1843
      %v1954 = vmax.f32 %v1810, %v1845
      %v1955 = vmax.f32 %v1811, %v1848
      %v1956 = vmax.f32 %v1812, %v1850
      %v1957 = vmax.f32 %v1813, %v1853
      %v1958 = vmax.f32 %v1814, %v1855
      %v1959 = vmax.f32 %v1815, %v1858
      %v1960 = vmax.f32 %v1816, %v1860
      %v1961 = vmax.f32 %v1817, %v1863
      %v1962 = vmax.f32 %v1818, %v1865
      %v1963 = vmax.f32 %v1819, %v1868
      %v1964 = vmax.f32 %v1820, %v1870
      %v1965 = vmax.f32 %v1821, %v1873
      %v1966 = vmax.f32 %v1822, %v1875
      %v1967 = vmax.f32 %v1823, %v1878
      %v1968 = vmax.f32 %v1824, %v1880
      %v1969 = vmax.f32 %v1825, %v1883
      %v1970 = vmax.f32 %v1826, %v1885
      %v1971 = vmax.f32 %v1827, %v1888
      %v1972 = vmax.f32 %v1828, %v1890
      %v1973 = vmax.f32 %v1829, %v1893
      %v1974 = vmax.f32 %v1830, %v1895
      %v1975 = vmax.f32 %v1831, %v1898
      %v1976 = vmax.f32 %v1832, %v1900
      %v1977 = vmax.f32 %v1833, %v1903
      %v1978 = vmax.f32 %v1834, %v1905
      %v1979 = vmax.f32 %v1835, %v1908
      %v1980 = vmax.f32 %v1836, %v1910
      %v1981 = vmax.f32 %v1837, %v1913
      %v1982 = vmax.f32 %v1838, %v1915
      %v1983 = vmax.f32 %v1839, %v1918
      %v1984 = vmax.f32 %v1840, %v1920
      %v1985 = vrot.slane %v1457, 4
      %v1986 = vrot.slane %v1458, 4
      %v1987 = vsel %vm1043, %v1985, %v1986
      %v1988 = vrot.slane %v1459, 4
      %v1989 = vsel %vm1043, %v1986, %v1988
      %v1990 = vrot.slane %v1460, 4
      %v1991 = vrot.slane %v1461, 4
      %v1992 = vsel %vm1043, %v1990, %v1991
      %v1993 = vrot.slane %v1462, 4
      %v1994 = vsel %vm1043, %v1991, %v1993
      %v1995 = vrot.slane %v1463, 4
      %v1996 = vrot.slane %v1464, 4
      %v1997 = vsel %vm1043, %v1995, %v1996
      %v1998 = vrot.slane %v1465, 4
      %v1999 = vsel %vm1043, %v1996, %v1998
      %v2000 = vrot.slane %v1466, 4
      %v2001 = vrot.slane %v1467, 4
      %v2002 = vsel %vm1043, %v2000, %v2001
      %v2003 = vrot.slane %v1468, 4
      %v2004 = vsel %vm1043, %v2001, %v2003
      %v2005 = vrot.slane %v1469, 4
      %v2006 = vrot.slane %v1470, 4
      %v2007 = vsel %vm1043, %v2005, %v2006
      %v2008 = vrot.slane %v1471, 4
      %v2009 = vsel %vm1043, %v2006, %v2008
      %v2010 = vrot.slane %v1472, 4
      %v2011 = vrot.slane %v1473, 4
      %v2012 = vsel %vm1043, %v2010, %v2011
      %v2013 = vrot.slane %v1474, 4
      %v2014 = vsel %vm1043, %v2011, %v2013
      %v2015 = vrot.slane %v1475, 4
      %v2016 = vrot.slane %v1476, 4
      %v2017 = vsel %vm1043, %v2015, %v2016
      %v2018 = vrot.slane %v1477, 4
      %v2019 = vsel %vm1043, %v2016, %v2018
      %v2020 = vrot.slane %v1478, 4
      %v2021 = vrot.slane %v1479, 4
      %v2022 = vsel %vm1043, %v2020, %v2021
      %v2023 = vrot.slane %v1480, 4
      %v2024 = vsel %vm1043, %v2021, %v2023
      %v2025 = vrot.slane %v1481, 4
      %v2026 = vrot.slane %v1482, 4
      %v2027 = vsel %vm1043, %v2025, %v2026
      %v2028 = vrot.slane %v1483, 4
      %v2029 = vsel %vm1043, %v2026, %v2028
      %v2030 = vrot.slane %v1484, 4
      %v2031 = vrot.slane %v1485, 4
      %v2032 = vsel %vm1043, %v2030, %v2031
      %v2033 = vrot.slane %v1486, 4
      %v2034 = vsel %vm1043, %v2031, %v2033
      %v2035 = vrot.slane %v1487, 4
      %v2036 = vrot.slane %v1488, 4
      %v2037 = vsel %vm1043, %v2035, %v2036
      %v2038 = vrot.slane %v1489, 4
      %v2039 = vsel %vm1043, %v2036, %v2038
      %v2040 = vrot.slane %v1490, 4
      %v2041 = vrot.slane %v1491, 4
      %v2042 = vsel %vm1043, %v2040, %v2041
      %v2043 = vrot.slane %v1492, 4
      %v2044 = vsel %vm1043, %v2041, %v2043
      %v2045 = vrot.slane %v1493, 4
      %v2046 = vrot.slane %v1494, 4
      %v2047 = vsel %vm1043, %v2045, %v2046
      %v2048 = vrot.slane %v1495, 4
      %v2049 = vsel %vm1043, %v2046, %v2048
      %v2050 = vrot.slane %v1496, 4
      %v2051 = vrot.slane %v1497, 4
      %v2052 = vsel %vm1043, %v2050, %v2051
      %v2053 = vrot.slane %v1498, 4
      %v2054 = vsel %vm1043, %v2051, %v2053
      %v2055 = vrot.slane %v1499, 4
      %v2056 = vrot.slane %v1500, 4
      %v2057 = vsel %vm1043, %v2055, %v2056
      %v2058 = vrot.slane %v1501, 4
      %v2059 = vsel %vm1043, %v2056, %v2058
      %v2060 = vrot.slane %v1502, 4
      %v2061 = vrot.slane %v1503, 4
      %v2062 = vsel %vm1043, %v2060, %v2061
      %v2063 = vrot.slane %v1504, 4
      %v2064 = vsel %vm1043, %v2061, %v2063
      %v2097 = vmax.f32 %v1953, %v1987
      %v2098 = vmax.f32 %v1954, %v1989
      %v2099 = vmax.f32 %v1955, %v1992
      %v2100 = vmax.f32 %v1956, %v1994
      %v2101 = vmax.f32 %v1957, %v1997
      %v2102 = vmax.f32 %v1958, %v1999
      %v2103 = vmax.f32 %v1959, %v2002
      %v2104 = vmax.f32 %v1960, %v2004
      %v2105 = vmax.f32 %v1961, %v2007
      %v2106 = vmax.f32 %v1962, %v2009
      %v2107 = vmax.f32 %v1963, %v2012
      %v2108 = vmax.f32 %v1964, %v2014
      %v2109 = vmax.f32 %v1965, %v2017
      %v2110 = vmax.f32 %v1966, %v2019
      %v2111 = vmax.f32 %v1967, %v2022
      %v2112 = vmax.f32 %v1968, %v2024
      %v2113 = vmax.f32 %v1969, %v2027
      %v2114 = vmax.f32 %v1970, %v2029
      %v2115 = vmax.f32 %v1971, %v2032
      %v2116 = vmax.f32 %v1972, %v2034
      %v2117 = vmax.f32 %v1973, %v2037
      %v2118 = vmax.f32 %v1974, %v2039
      %v2119 = vmax.f32 %v1975, %v2042
      %v2120 = vmax.f32 %v1976, %v2044
      %v2121 = vmax.f32 %v1977, %v2047
      %v2122 = vmax.f32 %v1978, %v2049
      %v2123 = vmax.f32 %v1979, %v2052
      %v2124 = vmax.f32 %v1980, %v2054
      %v2125 = vmax.f32 %v1981, %v2057
      %v2126 = vmax.f32 %v1982, %v2059
      %v2127 = vmax.f32 %v1983, %v2062
      %v2128 = vmax.f32 %v1984, %v2064
      %s2129 = scalar_lea.vmem %s147, 256
      %2130 = vst.msk [vmem:[%s2129] sm:$0xff] %vm181, %v2097
      %2131 = vst.msk [vmem:[%s2129 + $0x8] sm:$0xff] %vm181, %v2098
      %2132 = vst.msk [vmem:[%s2129 + $0x10] sm:$0xff] %vm181, %v2099
      %2133 = vst.msk [vmem:[%s2129 + $0x18] sm:$0xff] %vm181, %v2100
      %2134 = vst.msk [vmem:[%s2129 + $0x20] sm:$0xff] %vm181, %v2101
      %2135 = vst.msk [vmem:[%s2129 + $0x28] sm:$0xff] %vm181, %v2102
      %2136 = vst.msk [vmem:[%s2129 + $0x30] sm:$0xff] %vm181, %v2103
      %2137 = vst.msk [vmem:[%s2129 + $0x38] sm:$0xff] %vm181, %v2104
      %2138 = vst.msk [vmem:[%s2129 + $0x40] sm:$0xff] %vm181, %v2105
      %2139 = vst.msk [vmem:[%s2129 + $0x48] sm:$0xff] %vm181, %v2106
      %2140 = vst.msk [vmem:[%s2129 + $0x50] sm:$0xff] %vm181, %v2107
      %2141 = vst.msk [vmem:[%s2129 + $0x58] sm:$0xff] %vm181, %v2108
      %2142 = vst.msk [vmem:[%s2129 + $0x60] sm:$0xff] %vm181, %v2109
      %2143 = vst.msk [vmem:[%s2129 + $0x68] sm:$0xff] %vm181, %v2110
      %2144 = vst.msk [vmem:[%s2129 + $0x70] sm:$0xff] %vm181, %v2111
      %2145 = vst.msk [vmem:[%s2129 + $0x78] sm:$0xff] %vm181, %v2112
      %2146 = vst.msk [vmem:[%s2129 + $0x80] sm:$0xff] %vm181, %v2113
      %2147 = vst.msk [vmem:[%s2129 + $0x88] sm:$0xff] %vm181, %v2114
      %2148 = vst.msk [vmem:[%s2129 + $0x90] sm:$0xff] %vm181, %v2115
      %2149 = vst.msk [vmem:[%s2129 + $0x98] sm:$0xff] %vm181, %v2116
      %2150 = vst.msk [vmem:[%s2129 + $0xa0] sm:$0xff] %vm181, %v2117
      %2151 = vst.msk [vmem:[%s2129 + $0xa8] sm:$0xff] %vm181, %v2118
      %2152 = vst.msk [vmem:[%s2129 + $0xb0] sm:$0xff] %vm181, %v2119
      %2153 = vst.msk [vmem:[%s2129 + $0xb8] sm:$0xff] %vm181, %v2120
      %2154 = vst.msk [vmem:[%s2129 + $0xc0] sm:$0xff] %vm181, %v2121
      %2155 = vst.msk [vmem:[%s2129 + $0xc8] sm:$0xff] %vm181, %v2122
      %2156 = vst.msk [vmem:[%s2129 + $0xd0] sm:$0xff] %vm181, %v2123
      %2157 = vst.msk [vmem:[%s2129 + $0xd8] sm:$0xff] %vm181, %v2124
      %2158 = vst.msk [vmem:[%s2129 + $0xe0] sm:$0xff] %vm181, %v2125
      %2159 = vst.msk [vmem:[%s2129 + $0xe8] sm:$0xff] %vm181, %v2126
      %2160 = vst.msk [vmem:[%s2129 + $0xf0] sm:$0xff] %vm181, %v2127
      %2161 = vst.msk [vmem:[%s2129 + $0xf8] sm:$0xff] %vm181, %v2128
      %2162 = vst.msk [vmem:[%s275 + $0x2] sm:$0xff] %vm181, %v2097
      %2163 = vst.msk [vmem:[%s275 + $0xa] sm:$0xff] %vm181, %v2098
      %2164 = vst.msk [vmem:[%s275 + $0x1a] sm:$0xff] %vm181, %v2099
      %2165 = vst.msk [vmem:[%s275 + $0x22] sm:$0xff] %vm181, %v2100
      %2166 = vst.msk [vmem:[%s275 + $0x32] sm:$0xff] %vm181, %v2101
      %2167 = vst.msk [vmem:[%s275 + $0x3a] sm:$0xff] %vm181, %v2102
      %2168 = vst.msk [vmem:[%s275 + $0x4a] sm:$0xff] %vm181, %v2103
      %2169 = vst.msk [vmem:[%s275 + $0x52] sm:$0xff] %vm181, %v2104
      %2170 = vst.msk [vmem:[%s275 + $0x62] sm:$0xff] %vm181, %v2105
      %2171 = vst.msk [vmem:[%s275 + $0x6a] sm:$0xff] %vm181, %v2106
      %2172 = vst.msk [vmem:[%s275 + $0x7a] sm:$0xff] %vm181, %v2107
      %2173 = vst.msk [vmem:[%s275 + $0x82] sm:$0xff] %vm181, %v2108
      %2174 = vst.msk [vmem:[%s275 + $0x92] sm:$0xff] %vm181, %v2109
      %2175 = vst.msk [vmem:[%s275 + $0x9a] sm:$0xff] %vm181, %v2110
      %2176 = vst.msk [vmem:[%s275 + $0xaa] sm:$0xff] %vm181, %v2111
      %2177 = vst.msk [vmem:[%s275 + $0xb2] sm:$0xff] %vm181, %v2112
      %2178 = vst.msk [vmem:[%s275 + $0xc2] sm:$0xff] %vm181, %v2113
      %2179 = vst.msk [vmem:[%s275 + $0xca] sm:$0xff] %vm181, %v2114
      %2180 = vst.msk [vmem:[%s275 + $0xda] sm:$0xff] %vm181, %v2115
      %2181 = vst.msk [vmem:[%s275 + $0xe2] sm:$0xff] %vm181, %v2116
      %2182 = vst.msk [vmem:[%s275 + $0xf2] sm:$0xff] %vm181, %v2117
      %2183 = vst.msk [vmem:[%s275 + $0xfa] sm:$0xff] %vm181, %v2118
      %2184 = vst.msk [vmem:[%s275 + $0x10a] sm:$0xff] %vm181, %v2119
      %2185 = vst.msk [vmem:[%s275 + $0x112] sm:$0xff] %vm181, %v2120
      %2186 = vst.msk [vmem:[%s275 + $0x122] sm:$0xff] %vm181, %v2121
      %2187 = vst.msk [vmem:[%s275 + $0x12a] sm:$0xff] %vm181, %v2122
      %2188 = vst.msk [vmem:[%s275 + $0x13a] sm:$0xff] %vm181, %v2123
      %2189 = vst.msk [vmem:[%s275 + $0x142] sm:$0xff] %vm181, %v2124
      %2190 = vst.msk [vmem:[%s275 + $0x152] sm:$0xff] %vm181, %v2125
      %2191 = vst.msk [vmem:[%s275 + $0x15a] sm:$0xff] %vm181, %v2126
      %2192 = vst.msk [vmem:[%s275 + $0x16a] sm:$0xff] %vm181, %v2127
      %2193 = vst.msk [vmem:[%s275 + $0x172] sm:$0xff] %vm181, %v2128
      %v2194 = vld [vmem:[#allocation2] sm:$0xff]
      %v2195 = vld [vmem:[#allocation2 + $0x8] sm:$0xff]
      %v2196 = vld [vmem:[#allocation2 + $0x10] sm:$0xf]
      %v2197 = vld [vmem:[#allocation2 + $0x18] sm:$0xff]
      %v2198 = vld [vmem:[#allocation2 + $0x20] sm:$0xff]
      %v2199 = vld [vmem:[#allocation2 + $0x28] sm:$0xf]
      %v2200 = vld [vmem:[#allocation2 + $0x30] sm:$0xff]
      %v2201 = vld [vmem:[#allocation2 + $0x38] sm:$0xff]
      %v2202 = vld [vmem:[#allocation2 + $0x40] sm:$0xf]
      %v2203 = vld [vmem:[#allocation2 + $0x48] sm:$0xff]
      %v2204 = vld [vmem:[#allocation2 + $0x50] sm:$0xff]
      %v2205 = vld [vmem:[#allocation2 + $0x58] sm:$0xf]
      %v2206 = vld [vmem:[#allocation2 + $0x60] sm:$0xff]
      %v2207 = vld [vmem:[#allocation2 + $0x68] sm:$0xff]
      %v2208 = vld [vmem:[#allocation2 + $0x70] sm:$0xf]
      %v2209 = vld [vmem:[#allocation2 + $0x78] sm:$0xff]
      %v2210 = vld [vmem:[#allocation2 + $0x80] sm:$0xff]
      %v2211 = vld [vmem:[#allocation2 + $0x88] sm:$0xf]
      %v2212 = vld [vmem:[#allocation2 + $0x90] sm:$0xff]
      %v2213 = vld [vmem:[#allocation2 + $0x98] sm:$0xff]
      %v2214 = vld [vmem:[#allocation2 + $0xa0] sm:$0xf]
      %v2215 = vld [vmem:[#allocation2 + $0xa8] sm:$0xff]
      %v2216 = vld [vmem:[#allocation2 + $0xb0] sm:$0xff]
      %v2217 = vld [vmem:[#allocation2 + $0xb8] sm:$0xf]
      %v2218 = vld [vmem:[#allocation2 + $0xc0] sm:$0xff]
      %v2219 = vld [vmem:[#allocation2 + $0xc8] sm:$0xff]
      %v2220 = vld [vmem:[#allocation2 + $0xd0] sm:$0xf]
      %v2221 = vld [vmem:[#allocation2 + $0xd8] sm:$0xff]
      %v2222 = vld [vmem:[#allocation2 + $0xe0] sm:$0xff]
      %v2223 = vld [vmem:[#allocation2 + $0xe8] sm:$0xf]
      %v2224 = vld [vmem:[#allocation2 + $0xf0] sm:$0xff]
      %v2225 = vld [vmem:[#allocation2 + $0xf8] sm:$0xff]
      %v2226 = vld [vmem:[#allocation2 + $0x100] sm:$0xf]
      %v2227 = vld [vmem:[#allocation2 + $0x108] sm:$0xff]
      %v2228 = vld [vmem:[#allocation2 + $0x110] sm:$0xff]
      %v2229 = vld [vmem:[#allocation2 + $0x118] sm:$0xf]
      %v2230 = vld [vmem:[#allocation2 + $0x120] sm:$0xff]
      %v2231 = vld [vmem:[#allocation2 + $0x128] sm:$0xff]
      %v2232 = vld [vmem:[#allocation2 + $0x130] sm:$0xf]
      %v2233 = vld [vmem:[#allocation2 + $0x138] sm:$0xff]
      %v2234 = vld [vmem:[#allocation2 + $0x140] sm:$0xff]
      %v2235 = vld [vmem:[#allocation2 + $0x148] sm:$0xf]
      %v2236 = vld [vmem:[#allocation2 + $0x150] sm:$0xff]
      %v2237 = vld [vmem:[#allocation2 + $0x158] sm:$0xff]
      %v2238 = vld [vmem:[#allocation2 + $0x160] sm:$0xf]
      %v2239 = vld [vmem:[#allocation2 + $0x168] sm:$0xff]
      %v2240 = vld [vmem:[#allocation2 + $0x170] sm:$0xff]
      %v2241 = vld [vmem:[#allocation2 + $0x178] sm:$0xf]
      %v2242 = vld [vmem:[#allocation2 + $0x180] sm:$0xff]
      %v2243 = vld [vmem:[#allocation2 + $0x188] sm:$0xff]
      %v2244 = vld [vmem:[#allocation2 + $0x190] sm:$0xf]
      %v2245 = vld [vmem:[#allocation2 + $0x198] sm:$0xff]
      %v2246 = vld [vmem:[#allocation2 + $0x1a0] sm:$0xff]
      %v2247 = vld [vmem:[#allocation2 + $0x1a8] sm:$0xf]
      %v2248 = vld [vmem:[#allocation2 + $0x1b0] sm:$0xff]
      %v2249 = vld [vmem:[#allocation2 + $0x1b8] sm:$0xff]
      %v2250 = vld [vmem:[#allocation2 + $0x1c0] sm:$0xf]
      %v2251 = vld [vmem:[#allocation2 + $0x1c8] sm:$0xff]
      %v2252 = vld [vmem:[#allocation2 + $0x1d0] sm:$0xff]
      %v2253 = vld [vmem:[#allocation2 + $0x1d8] sm:$0xf]
      %v2254 = vmax.f32 %v2194, %v2197
      %v2255 = vmax.f32 %v2195, %v2198
      %v2256 = vmax.f32 %v2196, %v2199
      %v2257 = vmax.f32 %v2197, %v2200
      %v2258 = vmax.f32 %v2198, %v2201
      %v2259 = vmax.f32 %v2199, %v2202
      %v2260 = vmax.f32 %v2200, %v2203
      %v2261 = vmax.f32 %v2201, %v2204
      %v2262 = vmax.f32 %v2202, %v2205
      %v2263 = vmax.f32 %v2203, %v2206
      %v2264 = vmax.f32 %v2204, %v2207
      %v2265 = vmax.f32 %v2205, %v2208
      %v2266 = vmax.f32 %v2206, %v2209
      %v2267 = vmax.f32 %v2207, %v2210
      %v2268 = vmax.f32 %v2208, %v2211
      %v2269 = vmax.f32 %v2209, %v2212
      %v2270 = vmax.f32 %v2210, %v2213
      %v2271 = vmax.f32 %v2211, %v2214
      %v2272 = vmax.f32 %v2212, %v2215
      %v2273 = vmax.f32 %v2213, %v2216
      %v2274 = vmax.f32 %v2214, %v2217
      %v2275 = vmax.f32 %v2215, %v2218
      %v2276 = vmax.f32 %v2216, %v2219
      %v2277 = vmax.f32 %v2217, %v2220
      %v2278 = vmax.f32 %v2218, %v2221
      %v2279 = vmax.f32 %v2219, %v2222
      %v2280 = vmax.f32 %v2220, %v2223
      %v2281 = vmax.f32 %v2221, %v2224
      %v2282 = vmax.f32 %v2222, %v2225
      %v2283 = vmax.f32 %v2223, %v2226
      %v2284 = vmax.f32 %v2224, %v2227
      %v2285 = vmax.f32 %v2225, %v2228
      %v2286 = vmax.f32 %v2226, %v2229
      %v2287 = vmax.f32 %v2227, %v2230
      %v2288 = vmax.f32 %v2228, %v2231
      %v2289 = vmax.f32 %v2229, %v2232
      %v2290 = vmax.f32 %v2230, %v2233
      %v2291 = vmax.f32 %v2231, %v2234
      %v2292 = vmax.f32 %v2232, %v2235
      %v2293 = vmax.f32 %v2233, %v2236
      %v2294 = vmax.f32 %v2234, %v2237
      %v2295 = vmax.f32 %v2235, %v2238
      %v2296 = vmax.f32 %v2236, %v2239
      %v2297 = vmax.f32 %v2237, %v2240
      %v2298 = vmax.f32 %v2238, %v2241
      %v2299 = vmax.f32 %v2239, %v2242
      %v2300 = vmax.f32 %v2240, %v2243
      %v2301 = vmax.f32 %v2241, %v2244
      %v2302 = vmax.f32 %v2254, %v2200
      %v2303 = vmax.f32 %v2255, %v2201
      %v2304 = vmax.f32 %v2256, %v2202
      %v2305 = vmax.f32 %v2257, %v2203
      %v2306 = vmax.f32 %v2258, %v2204
      %v2307 = vmax.f32 %v2259, %v2205
      %v2308 = vmax.f32 %v2260, %v2206
      %v2309 = vmax.f32 %v2261, %v2207
      %v2310 = vmax.f32 %v2262, %v2208
      %v2311 = vmax.f32 %v2263, %v2209
      %v2312 = vmax.f32 %v2264, %v2210
      %v2313 = vmax.f32 %v2265, %v2211
      %v2314 = vmax.f32 %v2266, %v2212
      %v2315 = vmax.f32 %v2267, %v2213
      %v2316 = vmax.f32 %v2268, %v2214
      %v2317 = vmax.f32 %v2269, %v2215
      %v2318 = vmax.f32 %v2270, %v2216
      %v2319 = vmax.f32 %v2271, %v2217
      %v2320 = vmax.f32 %v2272, %v2218
      %v2321 = vmax.f32 %v2273, %v2219
      %v2322 = vmax.f32 %v2274, %v2220
      %v2323 = vmax.f32 %v2275, %v2221
      %v2324 = vmax.f32 %v2276, %v2222
      %v2325 = vmax.f32 %v2277, %v2223
      %v2326 = vmax.f32 %v2278, %v2224
      %v2327 = vmax.f32 %v2279, %v2225
      %v2328 = vmax.f32 %v2280, %v2226
      %v2329 = vmax.f32 %v2281, %v2227
      %v2330 = vmax.f32 %v2282, %v2228
      %v2331 = vmax.f32 %v2283, %v2229
      %v2332 = vmax.f32 %v2284, %v2230
      %v2333 = vmax.f32 %v2285, %v2231
      %v2334 = vmax.f32 %v2286, %v2232
      %v2335 = vmax.f32 %v2287, %v2233
      %v2336 = vmax.f32 %v2288, %v2234
      %v2337 = vmax.f32 %v2289, %v2235
      %v2338 = vmax.f32 %v2290, %v2236
      %v2339 = vmax.f32 %v2291, %v2237
      %v2340 = vmax.f32 %v2292, %v2238
      %v2341 = vmax.f32 %v2293, %v2239
      %v2342 = vmax.f32 %v2294, %v2240
      %v2343 = vmax.f32 %v2295, %v2241
      %v2344 = vmax.f32 %v2296, %v2242
      %v2345 = vmax.f32 %v2297, %v2243
      %v2346 = vmax.f32 %v2298, %v2244
      %v2347 = vmax.f32 %v2299, %v2245
      %v2348 = vmax.f32 %v2300, %v2246
      %v2349 = vmax.f32 %v2301, %v2247
      %v2350 = vmax.f32 %v2302, %v2203
      %v2351 = vmax.f32 %v2303, %v2204
      %v2352 = vmax.f32 %v2304, %v2205
      %v2353 = vmax.f32 %v2305, %v2206
      %v2354 = vmax.f32 %v2306, %v2207
      %v2355 = vmax.f32 %v2307, %v2208
      %v2356 = vmax.f32 %v2308, %v2209
      %v2357 = vmax.f32 %v2309, %v2210
      %v2358 = vmax.f32 %v2310, %v2211
      %v2359 = vmax.f32 %v2311, %v2212
      %v2360 = vmax.f32 %v2312, %v2213
      %v2361 = vmax.f32 %v2313, %v2214
      %v2362 = vmax.f32 %v2314, %v2215
      %v2363 = vmax.f32 %v2315, %v2216
      %v2364 = vmax.f32 %v2316, %v2217
      %v2365 = vmax.f32 %v2317, %v2218
      %v2366 = vmax.f32 %v2318, %v2219
      %v2367 = vmax.f32 %v2319, %v2220
      %v2368 = vmax.f32 %v2320, %v2221
      %v2369 = vmax.f32 %v2321, %v2222
      %v2370 = vmax.f32 %v2322, %v2223
      %v2371 = vmax.f32 %v2323, %v2224
      %v2372 = vmax.f32 %v2324, %v2225
      %v2373 = vmax.f32 %v2325, %v2226
      %v2374 = vmax.f32 %v2326, %v2227
      %v2375 = vmax.f32 %v2327, %v2228
      %v2376 = vmax.f32 %v2328, %v2229
      %v2377 = vmax.f32 %v2329, %v2230
      %v2378 = vmax.f32 %v2330, %v2231
      %v2379 = vmax.f32 %v2331, %v2232
      %v2380 = vmax.f32 %v2332, %v2233
      %v2381 = vmax.f32 %v2333, %v2234
      %v2382 = vmax.f32 %v2334, %v2235
      %v2383 = vmax.f32 %v2335, %v2236
      %v2384 = vmax.f32 %v2336, %v2237
      %v2385 = vmax.f32 %v2337, %v2238
      %v2386 = vmax.f32 %v2338, %v2239
      %v2387 = vmax.f32 %v2339, %v2240
      %v2388 = vmax.f32 %v2340, %v2241
      %v2389 = vmax.f32 %v2341, %v2242
      %v2390 = vmax.f32 %v2342, %v2243
      %v2391 = vmax.f32 %v2343, %v2244
      %v2392 = vmax.f32 %v2344, %v2245
      %v2393 = vmax.f32 %v2345, %v2246
      %v2394 = vmax.f32 %v2346, %v2247
      %v2395 = vmax.f32 %v2347, %v2248
      %v2396 = vmax.f32 %v2348, %v2249
      %v2397 = vmax.f32 %v2349, %v2250
      %v2398 = vmax.f32 %v2350, %v2206
      %v2399 = vmax.f32 %v2351, %v2207
      %v2400 = vmax.f32 %v2352, %v2208
      %v2401 = vmax.f32 %v2353, %v2209
      %v2402 = vmax.f32 %v2354, %v2210
      %v2403 = vmax.f32 %v2355, %v2211
      %v2404 = vmax.f32 %v2356, %v2212
      %v2405 = vmax.f32 %v2357, %v2213
      %v2406 = vmax.f32 %v2358, %v2214
      %v2407 = vmax.f32 %v2359, %v2215
      %v2408 = vmax.f32 %v2360, %v2216
      %v2409 = vmax.f32 %v2361, %v2217
      %v2410 = vmax.f32 %v2362, %v2218
      %v2411 = vmax.f32 %v2363, %v2219
      %v2412 = vmax.f32 %v2364, %v2220
      %v2413 = vmax.f32 %v2365, %v2221
      %v2414 = vmax.f32 %v2366, %v2222
      %v2415 = vmax.f32 %v2367, %v2223
      %v2416 = vmax.f32 %v2368, %v2224
      %v2417 = vmax.f32 %v2369, %v2225
      %v2418 = vmax.f32 %v2370, %v2226
      %v2419 = vmax.f32 %v2371, %v2227
      %v2420 = vmax.f32 %v2372, %v2228
      %v2421 = vmax.f32 %v2373, %v2229
      %v2422 = vmax.f32 %v2374, %v2230
      %v2423 = vmax.f32 %v2375, %v2231
      %v2424 = vmax.f32 %v2376, %v2232
      %v2425 = vmax.f32 %v2377, %v2233
      %v2426 = vmax.f32 %v2378, %v2234
      %v2427 = vmax.f32 %v2379, %v2235
      %v2428 = vmax.f32 %v2380, %v2236
      %v2429 = vmax.f32 %v2381, %v2237
      %v2430 = vmax.f32 %v2382, %v2238
      %v2431 = vmax.f32 %v2383, %v2239
      %v2432 = vmax.f32 %v2384, %v2240
      %v2433 = vmax.f32 %v2385, %v2241
      %v2434 = vmax.f32 %v2386, %v2242
      %v2435 = vmax.f32 %v2387, %v2243
      %v2436 = vmax.f32 %v2388, %v2244
      %v2437 = vmax.f32 %v2389, %v2245
      %v2438 = vmax.f32 %v2390, %v2246
      %v2439 = vmax.f32 %v2391, %v2247
      %v2440 = vmax.f32 %v2392, %v2248
      %v2441 = vmax.f32 %v2393, %v2249
      %v2442 = vmax.f32 %v2394, %v2250
      %v2443 = vmax.f32 %v2395, %v2251
      %v2444 = vmax.f32 %v2396, %v2252
      %v2445 = vmax.f32 %v2397, %v2253
      %v2494 = vrot.slane %v2398, 1
      %v2495 = vrot.slane %v2399, 1
      %v2496 = vsel %vm608, %v2494, %v2495
      %v2497 = vrot.slane %v2400, 1
      %v2498 = vsel %vm608, %v2495, %v2497
      %v2499 = vrot.slane %v2401, 1
      %v2500 = vrot.slane %v2402, 1
      %v2501 = vsel %vm608, %v2499, %v2500
      %v2502 = vrot.slane %v2403, 1
      %v2503 = vsel %vm608, %v2500, %v2502
      %v2504 = vrot.slane %v2404, 1
      %v2505 = vrot.slane %v2405, 1
      %v2506 = vsel %vm608, %v2504, %v2505
      %v2507 = vrot.slane %v2406, 1
      %v2508 = vsel %vm608, %v2505, %v2507
      %v2509 = vrot.slane %v2407, 1
      %v2510 = vrot.slane %v2408, 1
      %v2511 = vsel %vm608, %v2509, %v2510
      %v2512 = vrot.slane %v2409, 1
      %v2513 = vsel %vm608, %v2510, %v2512
      %v2514 = vrot.slane %v2410, 1
      %v2515 = vrot.slane %v2411, 1
      %v2516 = vsel %vm608, %v2514, %v2515
      %v2517 = vrot.slane %v2412, 1
      %v2518 = vsel %vm608, %v2515, %v2517
      %v2519 = vrot.slane %v2413, 1
      %v2520 = vrot.slane %v2414, 1
      %v2521 = vsel %vm608, %v2519, %v2520
      %v2522 = vrot.slane %v2415, 1
      %v2523 = vsel %vm608, %v2520, %v2522
      %v2524 = vrot.slane %v2416, 1
      %v2525 = vrot.slane %v2417, 1
      %v2526 = vsel %vm608, %v2524, %v2525
      %v2527 = vrot.slane %v2418, 1
      %v2528 = vsel %vm608, %v2525, %v2527
      %v2529 = vrot.slane %v2419, 1
      %v2530 = vrot.slane %v2420, 1
      %v2531 = vsel %vm608, %v2529, %v2530
      %v2532 = vrot.slane %v2421, 1
      %v2533 = vsel %vm608, %v2530, %v2532
      %v2534 = vrot.slane %v2422, 1
      %v2535 = vrot.slane %v2423, 1
      %v2536 = vsel %vm608, %v2534, %v2535
      %v2537 = vrot.slane %v2424, 1
      %v2538 = vsel %vm608, %v2535, %v2537
      %v2539 = vrot.slane %v2425, 1
      %v2540 = vrot.slane %v2426, 1
      %v2541 = vsel %vm608, %v2539, %v2540
      %v2542 = vrot.slane %v2427, 1
      %v2543 = vsel %vm608, %v2540, %v2542
      %v2544 = vrot.slane %v2428, 1
      %v2545 = vrot.slane %v2429, 1
      %v2546 = vsel %vm608, %v2544, %v2545
      %v2547 = vrot.slane %v2430, 1
      %v2548 = vsel %vm608, %v2545, %v2547
      %v2549 = vrot.slane %v2431, 1
      %v2550 = vrot.slane %v2432, 1
      %v2551 = vsel %vm608, %v2549, %v2550
      %v2552 = vrot.slane %v2433, 1
      %v2553 = vsel %vm608, %v2550, %v2552
      %v2554 = vrot.slane %v2434, 1
      %v2555 = vrot.slane %v2435, 1
      %v2556 = vsel %vm608, %v2554, %v2555
      %v2557 = vrot.slane %v2436, 1
      %v2558 = vsel %vm608, %v2555, %v2557
      %v2559 = vrot.slane %v2437, 1
      %v2560 = vrot.slane %v2438, 1
      %v2561 = vsel %vm608, %v2559, %v2560
      %v2562 = vrot.slane %v2439, 1
      %v2563 = vsel %vm608, %v2560, %v2562
      %v2564 = vrot.slane %v2440, 1
      %v2565 = vrot.slane %v2441, 1
      %v2566 = vsel %vm608, %v2564, %v2565
      %v2567 = vrot.slane %v2442, 1
      %v2568 = vsel %vm608, %v2565, %v2567
      %v2569 = vrot.slane %v2443, 1
      %v2570 = vrot.slane %v2444, 1
      %v2571 = vsel %vm608, %v2569, %v2570
      %v2572 = vrot.slane %v2445, 1
      %v2573 = vsel %vm608, %v2570, %v2572
      %v2606 = vmax.f32 %v2398, %v2496
      %v2607 = vmax.f32 %v2399, %v2498
      %v2608 = vmax.f32 %v2401, %v2501
      %v2609 = vmax.f32 %v2402, %v2503
      %v2610 = vmax.f32 %v2404, %v2506
      %v2611 = vmax.f32 %v2405, %v2508
      %v2612 = vmax.f32 %v2407, %v2511
      %v2613 = vmax.f32 %v2408, %v2513
      %v2614 = vmax.f32 %v2410, %v2516
      %v2615 = vmax.f32 %v2411, %v2518
      %v2616 = vmax.f32 %v2413, %v2521
      %v2617 = vmax.f32 %v2414, %v2523
      %v2618 = vmax.f32 %v2416, %v2526
      %v2619 = vmax.f32 %v2417, %v2528
      %v2620 = vmax.f32 %v2419, %v2531
      %v2621 = vmax.f32 %v2420, %v2533
      %v2622 = vmax.f32 %v2422, %v2536
      %v2623 = vmax.f32 %v2423, %v2538
      %v2624 = vmax.f32 %v2425, %v2541
      %v2625 = vmax.f32 %v2426, %v2543
      %v2626 = vmax.f32 %v2428, %v2546
      %v2627 = vmax.f32 %v2429, %v2548
      %v2628 = vmax.f32 %v2431, %v2551
      %v2629 = vmax.f32 %v2432, %v2553
      %v2630 = vmax.f32 %v2434, %v2556
      %v2631 = vmax.f32 %v2435, %v2558
      %v2632 = vmax.f32 %v2437, %v2561
      %v2633 = vmax.f32 %v2438, %v2563
      %v2634 = vmax.f32 %v2440, %v2566
      %v2635 = vmax.f32 %v2441, %v2568
      %v2636 = vmax.f32 %v2443, %v2571
      %v2637 = vmax.f32 %v2444, %v2573
      %v2638 = vrot.slane %v2398, 2
      %v2639 = vrot.slane %v2399, 2
      %v2640 = vsel %vm753, %v2638, %v2639
      %v2641 = vrot.slane %v2400, 2
      %v2642 = vsel %vm753, %v2639, %v2641
      %v2643 = vrot.slane %v2401, 2
      %v2644 = vrot.slane %v2402, 2
      %v2645 = vsel %vm753, %v2643, %v2644
      %v2646 = vrot.slane %v2403, 2
      %v2647 = vsel %vm753, %v2644, %v2646
      %v2648 = vrot.slane %v2404, 2
      %v2649 = vrot.slane %v2405, 2
      %v2650 = vsel %vm753, %v2648, %v2649
      %v2651 = vrot.slane %v2406, 2
      %v2652 = vsel %vm753, %v2649, %v2651
      %v2653 = vrot.slane %v2407, 2
      %v2654 = vrot.slane %v2408, 2
      %v2655 = vsel %vm753, %v2653, %v2654
      %v2656 = vrot.slane %v2409, 2
      %v2657 = vsel %vm753, %v2654, %v2656
      %v2658 = vrot.slane %v2410, 2
      %v2659 = vrot.slane %v2411, 2
      %v2660 = vsel %vm753, %v2658, %v2659
      %v2661 = vrot.slane %v2412, 2
      %v2662 = vsel %vm753, %v2659, %v2661
      %v2663 = vrot.slane %v2413, 2
      %v2664 = vrot.slane %v2414, 2
      %v2665 = vsel %vm753, %v2663, %v2664
      %v2666 = vrot.slane %v2415, 2
      %v2667 = vsel %vm753, %v2664, %v2666
      %v2668 = vrot.slane %v2416, 2
      %v2669 = vrot.slane %v2417, 2
      %v2670 = vsel %vm753, %v2668, %v2669
      %v2671 = vrot.slane %v2418, 2
      %v2672 = vsel %vm753, %v2669, %v2671
      %v2673 = vrot.slane %v2419, 2
      %v2674 = vrot.slane %v2420, 2
      %v2675 = vsel %vm753, %v2673, %v2674
      %v2676 = vrot.slane %v2421, 2
      %v2677 = vsel %vm753, %v2674, %v2676
      %v2678 = vrot.slane %v2422, 2
      %v2679 = vrot.slane %v2423, 2
      %v2680 = vsel %vm753, %v2678, %v2679
      %v2681 = vrot.slane %v2424, 2
      %v2682 = vsel %vm753, %v2679, %v2681
      %v2683 = vrot.slane %v2425, 2
      %v2684 = vrot.slane %v2426, 2
      %v2685 = vsel %vm753, %v2683, %v2684
      %v2686 = vrot.slane %v2427, 2
      %v2687 = vsel %vm753, %v2684, %v2686
      %v2688 = vrot.slane %v2428, 2
      %v2689 = vrot.slane %v2429, 2
      %v2690 = vsel %vm753, %v2688, %v2689
      %v2691 = vrot.slane %v2430, 2
      %v2692 = vsel %vm753, %v2689, %v2691
      %v2693 = vrot.slane %v2431, 2
      %v2694 = vrot.slane %v2432, 2
      %v2695 = vsel %vm753, %v2693, %v2694
      %v2696 = vrot.slane %v2433, 2
      %v2697 = vsel %vm753, %v2694, %v2696
      %v2698 = vrot.slane %v2434, 2
      %v2699 = vrot.slane %v2435, 2
      %v2700 = vsel %vm753, %v2698, %v2699
      %v2701 = vrot.slane %v2436, 2
      %v2702 = vsel %vm753, %v2699, %v2701
      %v2703 = vrot.slane %v2437, 2
      %v2704 = vrot.slane %v2438, 2
      %v2705 = vsel %vm753, %v2703, %v2704
      %v2706 = vrot.slane %v2439, 2
      %v2707 = vsel %vm753, %v2704, %v2706
      %v2708 = vrot.slane %v2440, 2
      %v2709 = vrot.slane %v2441, 2
      %v2710 = vsel %vm753, %v2708, %v2709
      %v2711 = vrot.slane %v2442, 2
      %v2712 = vsel %vm753, %v2709, %v2711
      %v2713 = vrot.slane %v2443, 2
      %v2714 = vrot.slane %v2444, 2
      %v2715 = vsel %vm753, %v2713, %v2714
      %v2716 = vrot.slane %v2445, 2
      %v2717 = vsel %vm753, %v2714, %v2716
      %v2750 = vmax.f32 %v2606, %v2640
      %v2751 = vmax.f32 %v2607, %v2642
      %v2752 = vmax.f32 %v2608, %v2645
      %v2753 = vmax.f32 %v2609, %v2647
      %v2754 = vmax.f32 %v2610, %v2650
      %v2755 = vmax.f32 %v2611, %v2652
      %v2756 = vmax.f32 %v2612, %v2655
      %v2757 = vmax.f32 %v2613, %v2657
      %v2758 = vmax.f32 %v2614, %v2660
      %v2759 = vmax.f32 %v2615, %v2662
      %v2760 = vmax.f32 %v2616, %v2665
      %v2761 = vmax.f32 %v2617, %v2667
      %v2762 = vmax.f32 %v2618, %v2670
      %v2763 = vmax.f32 %v2619, %v2672
      %v2764 = vmax.f32 %v2620, %v2675
      %v2765 = vmax.f32 %v2621, %v2677
      %v2766 = vmax.f32 %v2622, %v2680
      %v2767 = vmax.f32 %v2623, %v2682
      %v2768 = vmax.f32 %v2624, %v2685
      %v2769 = vmax.f32 %v2625, %v2687
      %v2770 = vmax.f32 %v2626, %v2690
      %v2771 = vmax.f32 %v2627, %v2692
      %v2772 = vmax.f32 %v2628, %v2695
      %v2773 = vmax.f32 %v2629, %v2697
      %v2774 = vmax.f32 %v2630, %v2700
      %v2775 = vmax.f32 %v2631, %v2702
      %v2776 = vmax.f32 %v2632, %v2705
      %v2777 = vmax.f32 %v2633, %v2707
      %v2778 = vmax.f32 %v2634, %v2710
      %v2779 = vmax.f32 %v2635, %v2712
      %v2780 = vmax.f32 %v2636, %v2715
      %v2781 = vmax.f32 %v2637, %v2717
      %v2782 = vrot.slane %v2398, 3
      %v2783 = vrot.slane %v2399, 3
      %v2784 = vsel %vm898, %v2782, %v2783
      %v2785 = vrot.slane %v2400, 3
      %v2786 = vsel %vm898, %v2783, %v2785
      %v2787 = vrot.slane %v2401, 3
      %v2788 = vrot.slane %v2402, 3
      %v2789 = vsel %vm898, %v2787, %v2788
      %v2790 = vrot.slane %v2403, 3
      %v2791 = vsel %vm898, %v2788, %v2790
      %v2792 = vrot.slane %v2404, 3
      %v2793 = vrot.slane %v2405, 3
      %v2794 = vsel %vm898, %v2792, %v2793
      %v2795 = vrot.slane %v2406, 3
      %v2796 = vsel %vm898, %v2793, %v2795
      %v2797 = vrot.slane %v2407, 3
      %v2798 = vrot.slane %v2408, 3
      %v2799 = vsel %vm898, %v2797, %v2798
      %v2800 = vrot.slane %v2409, 3
      %v2801 = vsel %vm898, %v2798, %v2800
      %v2802 = vrot.slane %v2410, 3
      %v2803 = vrot.slane %v2411, 3
      %v2804 = vsel %vm898, %v2802, %v2803
      %v2805 = vrot.slane %v2412, 3
      %v2806 = vsel %vm898, %v2803, %v2805
      %v2807 = vrot.slane %v2413, 3
      %v2808 = vrot.slane %v2414, 3
      %v2809 = vsel %vm898, %v2807, %v2808
      %v2810 = vrot.slane %v2415, 3
      %v2811 = vsel %vm898, %v2808, %v2810
      %v2812 = vrot.slane %v2416, 3
      %v2813 = vrot.slane %v2417, 3
      %v2814 = vsel %vm898, %v2812, %v2813
      %v2815 = vrot.slane %v2418, 3
      %v2816 = vsel %vm898, %v2813, %v2815
      %v2817 = vrot.slane %v2419, 3
      %v2818 = vrot.slane %v2420, 3
      %v2819 = vsel %vm898, %v2817, %v2818
      %v2820 = vrot.slane %v2421, 3
      %v2821 = vsel %vm898, %v2818, %v2820
      %v2822 = vrot.slane %v2422, 3
      %v2823 = vrot.slane %v2423, 3
      %v2824 = vsel %vm898, %v2822, %v2823
      %v2825 = vrot.slane %v2424, 3
      %v2826 = vsel %vm898, %v2823, %v2825
      %v2827 = vrot.slane %v2425, 3
      %v2828 = vrot.slane %v2426, 3
      %v2829 = vsel %vm898, %v2827, %v2828
      %v2830 = vrot.slane %v2427, 3
      %v2831 = vsel %vm898, %v2828, %v2830
      %v2832 = vrot.slane %v2428, 3
      %v2833 = vrot.slane %v2429, 3
      %v2834 = vsel %vm898, %v2832, %v2833
      %v2835 = vrot.slane %v2430, 3
      %v2836 = vsel %vm898, %v2833, %v2835
      %v2837 = vrot.slane %v2431, 3
      %v2838 = vrot.slane %v2432, 3
      %v2839 = vsel %vm898, %v2837, %v2838
      %v2840 = vrot.slane %v2433, 3
      %v2841 = vsel %vm898, %v2838, %v2840
      %v2842 = vrot.slane %v2434, 3
      %v2843 = vrot.slane %v2435, 3
      %v2844 = vsel %vm898, %v2842, %v2843
      %v2845 = vrot.slane %v2436, 3
      %v2846 = vsel %vm898, %v2843, %v2845
      %v2847 = vrot.slane %v2437, 3
      %v2848 = vrot.slane %v2438, 3
      %v2849 = vsel %vm898, %v2847, %v2848
      %v2850 = vrot.slane %v2439, 3
      %v2851 = vsel %vm898, %v2848, %v2850
      %v2852 = vrot.slane %v2440, 3
      %v2853 = vrot.slane %v2441, 3
      %v2854 = vsel %vm898, %v2852, %v2853
      %v2855 = vrot.slane %v2442, 3
      %v2856 = vsel %vm898, %v2853, %v2855
      %v2857 = vrot.slane %v2443, 3
      %v2858 = vrot.slane %v2444, 3
      %v2859 = vsel %vm898, %v2857, %v2858
      %v2860 = vrot.slane %v2445, 3
      %v2861 = vsel %vm898, %v2858, %v2860
      %v2894 = vmax.f32 %v2750, %v2784
      %v2895 = vmax.f32 %v2751, %v2786
      %v2896 = vmax.f32 %v2752, %v2789
      %v2897 = vmax.f32 %v2753, %v2791
      %v2898 = vmax.f32 %v2754, %v2794
      %v2899 = vmax.f32 %v2755, %v2796
      %v2900 = vmax.f32 %v2756, %v2799
      %v2901 = vmax.f32 %v2757, %v2801
      %v2902 = vmax.f32 %v2758, %v2804
      %v2903 = vmax.f32 %v2759, %v2806
      %v2904 = vmax.f32 %v2760, %v2809
      %v2905 = vmax.f32 %v2761, %v2811
      %v2906 = vmax.f32 %v2762, %v2814
      %v2907 = vmax.f32 %v2763, %v2816
      %v2908 = vmax.f32 %v2764, %v2819
      %v2909 = vmax.f32 %v2765, %v2821
      %v2910 = vmax.f32 %v2766, %v2824
      %v2911 = vmax.f32 %v2767, %v2826
      %v2912 = vmax.f32 %v2768, %v2829
      %v2913 = vmax.f32 %v2769, %v2831
      %v2914 = vmax.f32 %v2770, %v2834
      %v2915 = vmax.f32 %v2771, %v2836
      %v2916 = vmax.f32 %v2772, %v2839
      %v2917 = vmax.f32 %v2773, %v2841
      %v2918 = vmax.f32 %v2774, %v2844
      %v2919 = vmax.f32 %v2775, %v2846
      %v2920 = vmax.f32 %v2776, %v2849
      %v2921 = vmax.f32 %v2777, %v2851
      %v2922 = vmax.f32 %v2778, %v2854
      %v2923 = vmax.f32 %v2779, %v2856
      %v2924 = vmax.f32 %v2780, %v2859
      %v2925 = vmax.f32 %v2781, %v2861
      %v2926 = vrot.slane %v2398, 4
      %v2927 = vrot.slane %v2399, 4
      %v2928 = vsel %vm1043, %v2926, %v2927
      %v2929 = vrot.slane %v2400, 4
      %v2930 = vsel %vm1043, %v2927, %v2929
      %v2931 = vrot.slane %v2401, 4
      %v2932 = vrot.slane %v2402, 4
      %v2933 = vsel %vm1043, %v2931, %v2932
      %v2934 = vrot.slane %v2403, 4
      %v2935 = vsel %vm1043, %v2932, %v2934
      %v2936 = vrot.slane %v2404, 4
      %v2937 = vrot.slane %v2405, 4
      %v2938 = vsel %vm1043, %v2936, %v2937
      %v2939 = vrot.slane %v2406, 4
      %v2940 = vsel %vm1043, %v2937, %v2939
      %v2941 = vrot.slane %v2407, 4
      %v2942 = vrot.slane %v2408, 4
      %v2943 = vsel %vm1043, %v2941, %v2942
      %v2944 = vrot.slane %v2409, 4
      %v2945 = vsel %vm1043, %v2942, %v2944
      %v2946 = vrot.slane %v2410, 4
      %v2947 = vrot.slane %v2411, 4
      %v2948 = vsel %vm1043, %v2946, %v2947
      %v2949 = vrot.slane %v2412, 4
      %v2950 = vsel %vm1043, %v2947, %v2949
      %v2951 = vrot.slane %v2413, 4
      %v2952 = vrot.slane %v2414, 4
      %v2953 = vsel %vm1043, %v2951, %v2952
      %v2954 = vrot.slane %v2415, 4
      %v2955 = vsel %vm1043, %v2952, %v2954
      %v2956 = vrot.slane %v2416, 4
      %v2957 = vrot.slane %v2417, 4
      %v2958 = vsel %vm1043, %v2956, %v2957
      %v2959 = vrot.slane %v2418, 4
      %v2960 = vsel %vm1043, %v2957, %v2959
      %v2961 = vrot.slane %v2419, 4
      %v2962 = vrot.slane %v2420, 4
      %v2963 = vsel %vm1043, %v2961, %v2962
      %v2964 = vrot.slane %v2421, 4
      %v2965 = vsel %vm1043, %v2962, %v2964
      %v2966 = vrot.slane %v2422, 4
      %v2967 = vrot.slane %v2423, 4
      %v2968 = vsel %vm1043, %v2966, %v2967
      %v2969 = vrot.slane %v2424, 4
      %v2970 = vsel %vm1043, %v2967, %v2969
      %v2971 = vrot.slane %v2425, 4
      %v2972 = vrot.slane %v2426, 4
      %v2973 = vsel %vm1043, %v2971, %v2972
      %v2974 = vrot.slane %v2427, 4
      %v2975 = vsel %vm1043, %v2972, %v2974
      %v2976 = vrot.slane %v2428, 4
      %v2977 = vrot.slane %v2429, 4
      %v2978 = vsel %vm1043, %v2976, %v2977
      %v2979 = vrot.slane %v2430, 4
      %v2980 = vsel %vm1043, %v2977, %v2979
      %v2981 = vrot.slane %v2431, 4
      %v2982 = vrot.slane %v2432, 4
      %v2983 = vsel %vm1043, %v2981, %v2982
      %v2984 = vrot.slane %v2433, 4
      %v2985 = vsel %vm1043, %v2982, %v2984
      %v2986 = vrot.slane %v2434, 4
      %v2987 = vrot.slane %v2435, 4
      %v2988 = vsel %vm1043, %v2986, %v2987
      %v2989 = vrot.slane %v2436, 4
      %v2990 = vsel %vm1043, %v2987, %v2989
      %v2991 = vrot.slane %v2437, 4
      %v2992 = vrot.slane %v2438, 4
      %v2993 = vsel %vm1043, %v2991, %v2992
      %v2994 = vrot.slane %v2439, 4
      %v2995 = vsel %vm1043, %v2992, %v2994
      %v2996 = vrot.slane %v2440, 4
      %v2997 = vrot.slane %v2441, 4
      %v2998 = vsel %vm1043, %v2996, %v2997
      %v2999 = vrot.slane %v2442, 4
      %v3000 = vsel %vm1043, %v2997, %v2999
      %v3001 = vrot.slane %v2443, 4
      %v3002 = vrot.slane %v2444, 4
      %v3003 = vsel %vm1043, %v3001, %v3002
      %v3004 = vrot.slane %v2445, 4
      %v3005 = vsel %vm1043, %v3002, %v3004
      %v3038 = vmax.f32 %v2894, %v2928
      %v3039 = vmax.f32 %v2895, %v2930
      %v3040 = vmax.f32 %v2896, %v2933
      %v3041 = vmax.f32 %v2897, %v2935
      %v3042 = vmax.f32 %v2898, %v2938
      %v3043 = vmax.f32 %v2899, %v2940
      %v3044 = vmax.f32 %v2900, %v2943
      %v3045 = vmax.f32 %v2901, %v2945
      %v3046 = vmax.f32 %v2902, %v2948
      %v3047 = vmax.f32 %v2903, %v2950
      %v3048 = vmax.f32 %v2904, %v2953
      %v3049 = vmax.f32 %v2905, %v2955
      %v3050 = vmax.f32 %v2906, %v2958
      %v3051 = vmax.f32 %v2907, %v2960
      %v3052 = vmax.f32 %v2908, %v2963
      %v3053 = vmax.f32 %v2909, %v2965
      %v3054 = vmax.f32 %v2910, %v2968
      %v3055 = vmax.f32 %v2911, %v2970
      %v3056 = vmax.f32 %v2912, %v2973
      %v3057 = vmax.f32 %v2913, %v2975
      %v3058 = vmax.f32 %v2914, %v2978
      %v3059 = vmax.f32 %v2915, %v2980
      %v3060 = vmax.f32 %v2916, %v2983
      %v3061 = vmax.f32 %v2917, %v2985
      %v3062 = vmax.f32 %v2918, %v2988
      %v3063 = vmax.f32 %v2919, %v2990
      %v3064 = vmax.f32 %v2920, %v2993
      %v3065 = vmax.f32 %v2921, %v2995
      %v3066 = vmax.f32 %v2922, %v2998
      %v3067 = vmax.f32 %v2923, %v3000
      %v3068 = vmax.f32 %v2924, %v3003
      %v3069 = vmax.f32 %v2925, %v3005
      %3070 = vst.msk [vmem:[%s147] sm:$0xff] %vm181, %v3038
      %3071 = vst.msk [vmem:[%s147 + $0x8] sm:$0xff] %vm181, %v3039
      %3072 = vst.msk [vmem:[%s147 + $0x10] sm:$0xff] %vm181, %v3040
      %3073 = vst.msk [vmem:[%s147 + $0x18] sm:$0xff] %vm181, %v3041
      %3074 = vst.msk [vmem:[%s147 + $0x20] sm:$0xff] %vm181, %v3042
      %3075 = vst.msk [vmem:[%s147 + $0x28] sm:$0xff] %vm181, %v3043
      %3076 = vst.msk [vmem:[%s147 + $0x30] sm:$0xff] %vm181, %v3044
      %3077 = vst.msk [vmem:[%s147 + $0x38] sm:$0xff] %vm181, %v3045
      %3078 = vst.msk [vmem:[%s147 + $0x40] sm:$0xff] %vm181, %v3046
      %3079 = vst.msk [vmem:[%s147 + $0x48] sm:$0xff] %vm181, %v3047
      %3080 = vst.msk [vmem:[%s147 + $0x50] sm:$0xff] %vm181, %v3048
      %3081 = vst.msk [vmem:[%s147 + $0x58] sm:$0xff] %vm181, %v3049
      %3082 = vst.msk [vmem:[%s147 + $0x60] sm:$0xff] %vm181, %v3050
      %3083 = vst.msk [vmem:[%s147 + $0x68] sm:$0xff] %vm181, %v3051
      %3084 = vst.msk [vmem:[%s147 + $0x70] sm:$0xff] %vm181, %v3052
      %3085 = vst.msk [vmem:[%s147 + $0x78] sm:$0xff] %vm181, %v3053
      %3086 = vst.msk [vmem:[%s147 + $0x80] sm:$0xff] %vm181, %v3054
      %3087 = vst.msk [vmem:[%s147 + $0x88] sm:$0xff] %vm181, %v3055
      %3088 = vst.msk [vmem:[%s147 + $0x90] sm:$0xff] %vm181, %v3056
      %3089 = vst.msk [vmem:[%s147 + $0x98] sm:$0xff] %vm181, %v3057
      %3090 = vst.msk [vmem:[%s147 + $0xa0] sm:$0xff] %vm181, %v3058
      %3091 = vst.msk [vmem:[%s147 + $0xa8] sm:$0xff] %vm181, %v3059
      %3092 = vst.msk [vmem:[%s147 + $0xb0] sm:$0xff] %vm181, %v3060
      %3093 = vst.msk [vmem:[%s147 + $0xb8] sm:$0xff] %vm181, %v3061
      %3094 = vst.msk [vmem:[%s147 + $0xc0] sm:$0xff] %vm181, %v3062
      %3095 = vst.msk [vmem:[%s147 + $0xc8] sm:$0xff] %vm181, %v3063
      %3096 = vst.msk [vmem:[%s147 + $0xd0] sm:$0xff] %vm181, %v3064
      %3097 = vst.msk [vmem:[%s147 + $0xd8] sm:$0xff] %vm181, %v3065
      %3098 = vst.msk [vmem:[%s147 + $0xe0] sm:$0xff] %vm181, %v3066
      %3099 = vst.msk [vmem:[%s147 + $0xe8] sm:$0xff] %vm181, %v3067
      %3100 = vst.msk [vmem:[%s147 + $0xf0] sm:$0xff] %vm181, %v3068
      %3101 = vst.msk [vmem:[%s147 + $0xf8] sm:$0xff] %vm181, %v3069
      %p3102 = scmp.lt.s32.totalorder %s16, 1
      %s3103 = scalar_select %p3102, %s16, 1
      %p3104 = scmp.lt.s32.totalorder %s17, 0
      %s3105 = scalar_select %p3104, %s17, 0
      %s3106 = smul.addr %s3103, 128
      %s3107 = sadd.s32 %s3105, %s3106
      %s3108 = smul.addr %s3107, 8
      %s3109 = scalar_lea.vmem %s1, %s3108
      // Predicated region
      $region25: #{tpu_custom_call.1} parent=23 // pred_check
        %p3110 = pneg %p72
      $region26: #{tpu_custom_call.1} parent=23 // pred_check_branch
        %3112 = sbr.rel (%p3110) target = $region28
      $region27: #{tpu_custom_call.1} parent=23 // pred_region
        _
      $region28: #{tpu_custom_call.1} parent=23 // pred_fallthru
        _
    $region24: #{tpu_custom_call.1} parent=5 // pred_fallthru
      _
    %p3113 = scmp.le.s32.totalorder 2, %s7
    // Predicated region
    $region29: #{tpu_custom_call.1} parent=5 // pred_check
      %p3114 = pneg %p3113
    $region30: #{tpu_custom_call.1} parent=5 // pred_check_branch
      %3116 = sbr.rel (%p3114) target = $region32
    $region31: #{tpu_custom_call.1} parent=5 // pred_region
      %s3117 = ssub.s32 %s7, 2
      // Predicated region
      $region33: #{tpu_custom_call.1} parent=31 // pred_check
        %p3118 = pneg %p78
      $region34: #{tpu_custom_call.1} parent=31 // pred_check_branch
        %3120 = sbr.rel (%p3118) target = $region36
      $region35: #{tpu_custom_call.1} parent=31 // pred_region
        %p3121 = scmp.lt.s32.totalorder %s18, 1
        %s3122 = scalar_select %p3121, %s18, 1
        %p3123 = scmp.lt.s32.totalorder %s19, 0
        %s3124 = scalar_select %p3123, %s19, 0
        %s3125 = smul.addr %s3122, 128
        %s3126 = sadd.s32 %s3124, %s3125
        %s3127 = smul.addr %s3126, 8
        %s3128 = scalar_lea.vmem %s1, %s3127
      $region36: #{tpu_custom_call.1} parent=31 // pred_fallthru
        _
    $region32: #{tpu_custom_call.1} parent=5 // pred_fallthru
      _
  $region6: #{tpu_custom_call.1} parent=0 // loop_footer
    %s11 = sadd.s32 1, %s7
  $region7: #{tpu_custom_call.1} parent=0 // loop_footer_branch
    %6 = sbr.rel target = $region3
  $region8: #{tpu_custom_call.1} parent=0 // loop_exit
    _

</llo_original>
